<compile_context>
chip_gen: v6e
topology: v6e:2x2x1
jax: 0.10.0
libtpu: 0.0.40
codegen_flags: <defaults>
</compile_context>

<pallas_src>
import numpy as np
import jax
import jax.numpy as jnp
from jax.experimental import pallas as pl
from jax.experimental.pallas import tpu as pltpu

# ----- static model config (small shapes, consistent with the forward pass) -----
NUM_CLASSES      = 16
NC_PAD           = 128      # lane-dense padded logits width (sliced back to 16)
NUM_BLOCKS       = 2
PATCH_SIZE       = 4        # only used by the unused embd Conv2d
TOKENS_MLP_DIM   = 1        # forced to 1 by unsqueeze(1) + shape check in forward()
TOKENS_HIDDEN    = 8        # tokens_hidden_dim
CHANNELS_HIDDEN  = 256      # channels_hidden_dim
MAX_LEN          = 128
BATCH            = 16
BB               = BATCH    # one grid step covers the whole batch (grid=(1,))
EPS              = 1e-5     # nn.LayerNorm default
_SQRT_2_OVER_PI  = 0.7978845608028654

# ----- packed-parameter slab layouts (cuts prologue DMA count to 4) -----
# f32 "row" slab, SLAB_W lanes wide.  128-wide rows live in lanes [0:128].
SLAB_W    = 256
ROW_LNG   = 0                          # rows [ROW_LNG,  ROW_LNG+NB)  : LayerNorm gamma
ROW_LNB   = ROW_LNG + NUM_BLOCKS       # rows [ROW_LNB,  ROW_LNB+NB)  : LayerNorm beta
ROW_CB2   = ROW_LNB + NUM_BLOCKS       # rows [ROW_CB2,  ROW_CB2+NB)  : channel fc2 bias
ROW_FG    = ROW_CB2 + NUM_BLOCKS       # final LayerNorm gamma
ROW_FB    = ROW_FG + 1                 # final LayerNorm beta
ROW_FBIAS = ROW_FB + 1                 # head bias (padded to NC_PAD lanes)
ROW_CB1   = ROW_FBIAS + 1              # rows [ROW_CB1, ROW_CB1+NB)   : channel fc1 bias (256 lanes)
P32_ROWS  = ROW_CB1 + NUM_BLOCKS

# bf16 weight slab, SLAB_W lanes wide.
W_CW1  = 0                                   # rows [i*L,(i+1)*L) x [0:C_H)      : cw1[i]
W_CW2  = W_CW1 + NUM_BLOCKS * MAX_LEN        # rows [W_CW2,+C_H) x [i*L:(i+1)*L) : cw2[i]
W_FW   = W_CW2 + CHANNELS_HIDDEN             # rows [W_FW,+L)    x [0:NC_PAD)    : head weight
W_ROWS = W_FW + MAX_LEN

assert NUM_BLOCKS * MAX_LEN <= SLAB_W        # cw2 blocks are packed along lanes
assert CHANNELS_HIDDEN <= SLAB_W and NC_PAD <= SLAB_W and MAX_LEN <= SLAB_W

# SMEM token-mixing slab columns: [tw1 | tb1 | 0.5*tw2 | tb2]  per block
TOK_TW1  = 0
TOK_TB1  = TOKENS_HIDDEN
TOK_TW2H = 2 * TOKENS_HIDDEN
TOK_TB2  = 3 * TOKENS_HIDDEN
TOK_COLS = 3 * TOKENS_HIDDEN + 1


# ---------------- in-kernel math helpers ----------------
def _gelu_tanh(x):
    # tanh-form GELU: transcendental goes to the EUP slot.
    return 0.5 * x * (1.0 + jnp.tanh(_SQRT_2_OVER_PI * (x + 0.044715 * x * x * x)))


def _token_term(y, a, b, c_half):
    # One token-mixing hidden unit: c_half already carries the GELU 0.5 factor
    # (folded at prep time), so this is tw2[h] * gelu_tanh(tw1[h]*y + tb1[h]).
    u = a * y + b
    inner = jnp.tanh(_SQRT_2_OVER_PI * (u + 0.044715 * (u * u * u)))
    return (c_half * u) * (1.0 + inner)


def _tree_sum(xs):
    # Pairwise tree reduction: keeps the adds shallow so the independent GELU terms
    # (EUP-latency bound) can pipeline instead of forming one serial accumulation chain.
    while len(xs) > 1:
        nxt = [xs[j] + xs[j + 1] for j in range(0, len(xs) - 1, 2)]
        if len(xs) % 2:
            nxt.append(xs[-1])
        xs = nxt
    return xs[0]


def _layernorm(x, g, b):
    # E[x^2] - mu^2 form: the two cross-lane reductions are data-independent and can
    # overlap in the XLU slots.  Clamp variance at 0 (f32 rounding can make it slightly
    # negative for near-constant rows, which would NaN through rsqrt).
    mu = jnp.mean(x, axis=-1, keepdims=True)
    ex2 = jnp.mean(x * x, axis=-1, keepdims=True)
    var = jnp.maximum(ex2 - mu * mu, 0.0)
    return (x - mu) * jax.lax.rsqrt(var + EPS) * g + b


# --------------------------------- Pallas kernel -----------------------------------
def mixer_kernel(
    tok_ref,                                   # SMEM (NB, TOK_COLS) f32 token-MLP params
    x_ref,                                     # VMEM (BB, L)           f32
    p32_ref,                                   # VMEM (P32_ROWS, 256)   f32 row slab
    w_ref,                                     # VMEM (W_ROWS, 256)     bf16 weight slab
    out_ref,                                   # VMEM (BB, NC_PAD)      f32
):
    L, CH = MAX_LEN, CHANNELS_HIDDEN
    x = x_ref[...]                             # (BB, L) float32

    for i in range(NUM_BLOCKS):                # static unroll over mixer blocks
        g   = p32_ref[ROW_LNG + i:ROW_LNG + i + 1, 0:L]     # (1, L)
        bt  = p32_ref[ROW_LNB + i:ROW_LNB + i + 1, 0:L]     # (1, L)
        cb1 = p32_ref[ROW_CB1 + i:ROW_CB1 + i + 1, 0:CH]    # (1, C_H)
        cb2 = p32_ref[ROW_CB2 + i:ROW_CB2 + i + 1, 0:L]     # (1, L)
        cw1 = w_ref[i * L:(i + 1) * L, 0:CH]                 # (L, C_H)  bf16
        cw2 = w_ref[W_CW2:W_CW2 + CH, i * L:(i + 1) * L]     # (C_H, L)  bf16

        # --- token-mixing branch (tokens dim == 1 -> per-element MLP chain) ---
        y = _layernorm(x, g, bt)
        terms = [
            _token_term(y,
                        tok_ref[i, TOK_TW1 + h],
                        tok_ref[i, TOK_TB1 + h],
                        tok_ref[i, TOK_TW2H + h])
            for h in range(TOKENS_HIDDEN)      # independent terms, tree-reduced below
        ]
        t = _tree_sum(terms) + tok_ref[i, TOK_TB2]
        out = x + t                            # residual

        # --- channel-mixing branch (L -> C_H -> L on the MXU, bf16 x bf16 -> f32) ---
        z = _layernorm(out, g, bt)             # same ln instance reused (as in torch)
        h1 = _gelu_tanh(
            jnp.dot(z.astype(jnp.bfloat16), cw1,
                    preferred_element_type=jnp.float32) + cb1)
        z2 = jnp.dot(h1.astype(jnp.bfloat16), cw2,
                     preferred_element_type=jnp.float32) + cb2
        x = out + z2                           # residual

    # --- head: final LayerNorm, mean over tokens (size 1 -> identity), Linear ---
    fg    = p32_ref[ROW_FG:ROW_FG + 1, 0:L]
    fb    = p32_ref[ROW_FB:ROW_FB + 1, 0:L]
    fbias = p32_ref[ROW_FBIAS:ROW_FBIAS + 1, 0:NC_PAD]
    fw    = w_ref[W_FW:W_FW + L, 0:NC_PAD]                   # (L, NC_PAD) bf16

    yf = _layernorm(x, fg, fb)
    logits = jnp.dot(yf.astype(jnp.bfloat16), fw,
                     preferred_element_type=jnp.float32) + fbias
    out_ref[...] = logits.astype(out_ref.dtype)              # lane-dense (BB, 128) store


# ------------------------- one-time parameter preparation ---------------------------
def prepare_params(p):
    """Pack raw parameters into the three slabs the kernel consumes.  Called once."""
    NB, L, CH, TH = NUM_BLOCKS, MAX_LEN, CHANNELS_HIDDEN, TOKENS_HIDDEN

    # SMEM token-mixing slab: [tw1 | tb1 | 0.5*tw2 | tb2]  (GELU 0.5 folded into fc2 w)
    tok = jnp.concatenate(
        [p["tw1"], p["tb1"], 0.5 * p["tw2"], p["tb2"]], axis=1).astype(jnp.float32)
    assert tok.shape == (NB, TOK_COLS)

    # f32 row slab (all LayerNorm params and biases).
    p32 = jnp.zeros((P32_ROWS, SLAB_W), jnp.float32)
    p32 = p32.at[ROW_LNG:ROW_LNG + NB, :L].set(p["lng"].reshape(NB, L))
    p32 = p32.at[ROW_LNB:ROW_LNB + NB, :L].set(p["lnb"].reshape(NB, L))
    p32 = p32.at[ROW_CB2:ROW_CB2 + NB, :L].set(p["cb2"].reshape(NB, L))
    p32 = p32.at[ROW_FG, :L].set(p["fg"].reshape(L))
    p32 = p32.at[ROW_FB, :L].set(p["fb"].reshape(L))
    p32 = p32.at[ROW_FBIAS, :NUM_CLASSES].set(p["fbias"].reshape(NUM_CLASSES))
    p32 = p32.at[ROW_CB1:ROW_CB1 + NB, :CH].set(p["cb1"].reshape(NB, CH))

    # bf16 matmul-weight slab (half the DMA bytes, single-pass MXU).
    wslab = jnp.zeros((W_ROWS, SLAB_W), jnp.float32)
    wslab = wslab.at[W_CW1:W_CW1 + NB * L, :CH].set(p["cw1"].reshape(NB * L, CH))
    for i in range(NB):
        wslab = wslab.at[W_CW2:W_CW2 + CH, i * L:(i + 1) * L].set(p["cw2"][i])
    wslab = wslab.at[W_FW:W_FW + L, :NUM_CLASSES].set(p["fw"])
    wslab = wslab.astype(jnp.bfloat16)

    return {"tok": tok, "p32": p32, "wslab": wslab}


# ----------------------------------- wrapper ----------------------------------------
def mlp_mixer_forward(x, prep):
    bs, L = x.shape
    assert L == MAX_LEN and bs % BB == 0
    grid = (bs // BB,)                         # (1,) at this batch size

    smem_spec = pl.BlockSpec(memory_space=pltpu.MemorySpace.SMEM)

    out = pl.pallas_call(
        mixer_kernel,
        out_shape=jax.ShapeDtypeStruct((bs, NC_PAD), jnp.float32),
        grid=grid,
        in_specs=[
            smem_spec,                                            # tok (SMEM)
            pl.BlockSpec((BB, L), lambda b: (b, 0)),              # x
            pl.BlockSpec((P32_ROWS, SLAB_W), lambda b: (0, 0)),   # f32 row slab
            pl.BlockSpec((W_ROWS, SLAB_W), lambda b: (0, 0)),     # bf16 weight slab
        ],
        out_specs=pl.BlockSpec((BB, NC_PAD), lambda b: (b, 0)),
        compiler_params=pltpu.CompilerParams(dimension_semantics=("parallel",)),
    )(prep["tok"], x, prep["p32"], prep["wslab"])
    return out[:, :NUM_CLASSES]


# --------------------------- pure-JAX reference (for checking) ----------------------
def mlp_mixer_reference(x, p):
    # f32, exact erf GELU, two-pass LayerNorm -- mirrors the PyTorch module (minus f64).
    def gelu_exact(v):
        return 0.5 * v * (1.0 + jax.scipy.special.erf(v * 0.7071067811865476))

    def layernorm(v, g, b):
        mu = jnp.mean(v, axis=-1, keepdims=True)
        var = jnp.mean((v - mu) * (v - mu), axis=-1, keepdims=True)
        return (v - mu) * jax.lax.rsqrt(var + EPS) * g + b

    y = x
    for i in range(NUM_BLOCKS):
        g, b = p["lng"][i], p["lnb"][i]
        z = layernorm(y, g, b)
        t = jnp.zeros_like(z)
        for h in range(TOKENS_HIDDEN):
            t = t + p["tw2"][i, h] * gelu_exact(p["tw1"][i, h] * z + p["tb1"][i, h])
        t = t + p["tb2"][i, 0]
        out = y + t
        z2 = layernorm(out, g, b)
        h1 = gelu_exact(z2 @ p["cw1"][i] + p["cb1"][i])
        y = out + (h1 @ p["cw2"][i] + p["cb2"][i])
    z = layernorm(y, p["fg"], p["fb"])
    return z @ p["fw"] + p["fbias"]


# ------------------------------------- main ------------------------------------------
if __name__ == "__main__":
    key = jax.random.PRNGKey(0)
    keys = jax.random.split(key, 12)

    def unif(k, shape, fan_in):
        bound = 1.0 / float(fan_in) ** 0.5
        return jax.random.uniform(k, shape, jnp.float32, -bound, bound)

    # deterministic synthetic parameters (shapes follow the nn.Module __init__)
    params = {
        # MlpBlock(tokens_mlp_dim=1, mlp_dim=TOKENS_HIDDEN): fc1(1->T_H), fc2(T_H->1)
        "tw1": unif(keys[1], (NUM_BLOCKS, TOKENS_HIDDEN), 1),
        "tb1": unif(keys[2], (NUM_BLOCKS, TOKENS_HIDDEN), 1),
        "tw2": unif(keys[3], (NUM_BLOCKS, TOKENS_HIDDEN), TOKENS_HIDDEN),
        "tb2": unif(keys[4], (NUM_BLOCKS, 1), TOKENS_HIDDEN),
        # per-block LayerNorm(max_len) -- PyTorch default init (ones / zeros)
        "lng": jnp.ones((NUM_BLOCKS, 1, MAX_LEN), jnp.float32),
        "lnb": jnp.zeros((NUM_BLOCKS, 1, MAX_LEN), jnp.float32),
        # MlpBlock(max_len, mlp_dim=CHANNELS_HIDDEN): fc1(L->C_H), fc2(C_H->L)
        "cw1": unif(keys[5], (NUM_BLOCKS, MAX_LEN, CHANNELS_HIDDEN), MAX_LEN),
        "cb1": unif(keys[6], (NUM_BLOCKS, 1, CHANNELS_HIDDEN), MAX_LEN),
        "cw2": unif(keys[7], (NUM_BLOCKS, CHANNELS_HIDDEN, MAX_LEN), CHANNELS_HIDDEN),
        "cb2": unif(keys[8], (NUM_BLOCKS, 1, MAX_LEN), CHANNELS_HIDDEN),
        # final LayerNorm + classifier head Linear(max_len -> num_classes)
        "fg": jnp.ones((1, MAX_LEN), jnp.float32),
        "fb": jnp.zeros((1, MAX_LEN), jnp.float32),
        "fw": unif(keys[9], (MAX_LEN, NUM_CLASSES), MAX_LEN),
        "fbias": unif(keys[10], (1, NUM_CLASSES), MAX_LEN),
    }

    # model input: (batch, max_len); forward() unsqueezes a size-1 tokens dim.
    x = jax.random.normal(keys[0], (BATCH, MAX_LEN), jnp.float32)

    # one-time weight preparation (hoisted out of the per-call path)
    prep = jax.tree_util.tree_map(jax.block_until_ready, prepare_params(params))

    out = mlp_mixer_forward(x, prep)
    out = jax.block_until_ready(out)

    ref = mlp_mixer_reference(x, params)
    assert out.shape == (BATCH, NUM_CLASSES)
    np.testing.assert_allclose(np.asarray(out), np.asarray(ref), rtol=2e-2, atol=2e-2)

    print("KERNEL_OK")
</pallas_src>

<mosaic_0001>
module attributes {stable_mosaic.version = 11 : i64} {
  func.func @mixer_kernel(%arg0: i32, %arg1: memref<2x25xf32, #tpu.memory_space<smem>>, %arg2: memref<16x128xf32, #tpu.memory_space<vmem>>, %arg3: memref<11x256xf32, #tpu.memory_space<vmem>>, %arg4: memref<640x256xbf16, #tpu.memory_space<vmem>>, %arg5: memref<16x128xf32, #tpu.memory_space<vmem>>) attributes {dimension_semantics = [#tpu.dimension_semantics<parallel>], iteration_bounds = array<i64: 1>, scalar_prefetch = 0 : i64, scratch_operands = 0 : i64, tpu.core_type = #tpu.core_type<tc>, window_params = [{transform_indices = @transform_0, window_bounds = array<i64: 2, 25>}, {transform_indices = @transform_1, window_bounds = array<i64: 16, 128>}, {pipeline_mode = #tpu.pipeline_mode<synchronous>, transform_indices = @transform_2, window_bounds = array<i64: 11, 256>}, {pipeline_mode = #tpu.pipeline_mode<synchronous>, transform_indices = @transform_3, window_bounds = array<i64: 640, 256>}, {transform_indices = @transform_4, window_bounds = array<i64: 16, 128>}]} {
    %c0 = arith.constant 0 : index
    %c0_0 = arith.constant 0 : index
    %0 = vector.load %arg2[%c0, %c0_0] : memref<16x128xf32, #tpu.memory_space<vmem>>, vector<16x128xf32>
    %c0_1 = arith.constant 0 : index
    %c0_2 = arith.constant 0 : index
    %1 = vector.load %arg3[%c0_1, %c0_2] : memref<11x256xf32, #tpu.memory_space<vmem>>, vector<1x128xf32>
    %c2 = arith.constant 2 : index
    %c0_3 = arith.constant 0 : index
    %2 = vector.load %arg3[%c2, %c0_3] : memref<11x256xf32, #tpu.memory_space<vmem>>, vector<1x128xf32>
    %c9 = arith.constant 9 : index
    %c0_4 = arith.constant 0 : index
    %3 = vector.load %arg3[%c9, %c0_4] : memref<11x256xf32, #tpu.memory_space<vmem>>, vector<1x256xf32>
    %c4 = arith.constant 4 : index
    %c0_5 = arith.constant 0 : index
    %4 = vector.load %arg3[%c4, %c0_5] : memref<11x256xf32, #tpu.memory_space<vmem>>, vector<1x128xf32>
    %c0_6 = arith.constant 0 : index
    %c0_7 = arith.constant 0 : index
    %5 = vector.load %arg4[%c0_6, %c0_7] : memref<640x256xbf16, #tpu.memory_space<vmem>>, vector<128x256xbf16>
    %c256 = arith.constant 256 : index
    %c0_8 = arith.constant 0 : index
    %6 = vector.load %arg4[%c256, %c0_8] : memref<640x256xbf16, #tpu.memory_space<vmem>>, vector<256x128xbf16>
    %cst = arith.constant dense<0.000000e+00> : vector<16xf32>
    %7 = vector.multi_reduction <add>, %0, %cst [1] : vector<16x128xf32> to vector<16xf32>
    %8 = vector.shape_cast %7 : vector<16xf32> to vector<16x1xf32>
    %cst_9 = arith.constant 1.280000e+02 : f32
    %9 = vector.broadcast %cst_9 : f32 to vector<16x1xf32>
    %10 = arith.divf %8, %9 : vector<16x1xf32>
    %11 = arith.mulf %0, %0 : vector<16x128xf32>
    %cst_10 = arith.constant dense<0.000000e+00> : vector<16xf32>
    %12 = vector.multi_reduction <add>, %11, %cst_10 [1] : vector<16x128xf32> to vector<16xf32>
    %13 = vector.shape_cast %12 : vector<16xf32> to vector<16x1xf32>
    %cst_11 = arith.constant 1.280000e+02 : f32
    %14 = vector.broadcast %cst_11 : f32 to vector<16x1xf32>
    %15 = arith.divf %13, %14 : vector<16x1xf32>
    %16 = arith.mulf %10, %10 : vector<16x1xf32>
    %17 = arith.subf %15, %16 : vector<16x1xf32>
    %cst_12 = arith.constant 0.000000e+00 : f32
    %18 = vector.broadcast %cst_12 : f32 to vector<16x1xf32>
    %19 = arith.maximumf %17, %18 : vector<16x1xf32>
    %20 = vector.broadcast %10 : vector<16x1xf32> to vector<16x128xf32>
    %21 = arith.subf %0, %20 : vector<16x128xf32>
    %cst_13 = arith.constant 9.99999974E-6 : f32
    %22 = vector.broadcast %cst_13 : f32 to vector<16x1xf32>
    %23 = arith.addf %19, %22 : vector<16x1xf32>
    %24 = math.rsqrt %23 : vector<16x1xf32>
    %25 = vector.broadcast %24 : vector<16x1xf32> to vector<16x128xf32>
    %26 = arith.mulf %21, %25 : vector<16x128xf32>
    %27 = vector.broadcast %1 : vector<1x128xf32> to vector<16x128xf32>
    %28 = arith.mulf %26, %27 : vector<16x128xf32>
    %29 = vector.broadcast %2 : vector<1x128xf32> to vector<16x128xf32>
    %30 = arith.addf %28, %29 : vector<16x128xf32>
    %c0_14 = arith.constant 0 : index
    %c0_15 = arith.constant 0 : index
    %31 = memref.load %arg1[%c0_14, %c0_15] : memref<2x25xf32, #tpu.memory_space<smem>>
    %c0_16 = arith.constant 0 : index
    %c8 = arith.constant 8 : index
    %32 = memref.load %arg1[%c0_16, %c8] : memref<2x25xf32, #tpu.memory_space<smem>>
    %c0_17 = arith.constant 0 : index
    %c16 = arith.constant 16 : index
    %33 = memref.load %arg1[%c0_17, %c16] : memref<2x25xf32, #tpu.memory_space<smem>>
    %34 = vector.broadcast %31 : f32 to vector<16x128xf32>
    %35 = arith.mulf %34, %30 : vector<16x128xf32>
    %36 = vector.broadcast %32 : f32 to vector<16x128xf32>
    %37 = arith.addf %35, %36 : vector<16x128xf32>
    %38 = arith.mulf %37, %37 : vector<16x128xf32>
    %39 = arith.mulf %38, %37 : vector<16x128xf32>
    %cst_18 = arith.constant 4.471500e-02 : f32
    %40 = vector.broadcast %cst_18 : f32 to vector<16x128xf32>
    %41 = arith.mulf %40, %39 : vector<16x128xf32>
    %42 = arith.addf %37, %41 : vector<16x128xf32>
    %cst_19 = arith.constant 0.797884583 : f32
    %43 = vector.broadcast %cst_19 : f32 to vector<16x128xf32>
    %44 = arith.mulf %43, %42 : vector<16x128xf32>
    %45 = math.tanh %44 : vector<16x128xf32>
    %46 = vector.broadcast %33 : f32 to vector<16x128xf32>
    %47 = arith.mulf %46, %37 : vector<16x128xf32>
    %cst_20 = arith.constant 1.000000e+00 : f32
    %48 = vector.broadcast %cst_20 : f32 to vector<16x128xf32>
    %49 = arith.addf %48, %45 : vector<16x128xf32>
    %50 = arith.mulf %47, %49 : vector<16x128xf32>
    %c0_21 = arith.constant 0 : index
    %c1 = arith.constant 1 : index
    %51 = memref.load %arg1[%c0_21, %c1] : memref<2x25xf32, #tpu.memory_space<smem>>
    %c0_22 = arith.constant 0 : index
    %c9_23 = arith.constant 9 : index
    %52 = memref.load %arg1[%c0_22, %c9_23] : memref<2x25xf32, #tpu.memory_space<smem>>
    %c0_24 = arith.constant 0 : index
    %c17 = arith.constant 17 : index
    %53 = memref.load %arg1[%c0_24, %c17] : memref<2x25xf32, #tpu.memory_space<smem>>
    %54 = vector.broadcast %51 : f32 to vector<16x128xf32>
    %55 = arith.mulf %54, %30 : vector<16x128xf32>
    %56 = vector.broadcast %52 : f32 to vector<16x128xf32>
    %57 = arith.addf %55, %56 : vector<16x128xf32>
    %58 = arith.mulf %57, %57 : vector<16x128xf32>
    %59 = arith.mulf %58, %57 : vector<16x128xf32>
    %cst_25 = arith.constant 4.471500e-02 : f32
    %60 = vector.broadcast %cst_25 : f32 to vector<16x128xf32>
    %61 = arith.mulf %60, %59 : vector<16x128xf32>
    %62 = arith.addf %57, %61 : vector<16x128xf32>
    %cst_26 = arith.constant 0.797884583 : f32
    %63 = vector.broadcast %cst_26 : f32 to vector<16x128xf32>
    %64 = arith.mulf %63, %62 : vector<16x128xf32>
    %65 = math.tanh %64 : vector<16x128xf32>
    %66 = vector.broadcast %53 : f32 to vector<16x128xf32>
    %67 = arith.mulf %66, %57 : vector<16x128xf32>
    %cst_27 = arith.constant 1.000000e+00 : f32
    %68 = vector.broadcast %cst_27 : f32 to vector<16x128xf32>
    %69 = arith.addf %68, %65 : vector<16x128xf32>
    %70 = arith.mulf %67, %69 : vector<16x128xf32>
    %c0_28 = arith.constant 0 : index
    %c2_29 = arith.constant 2 : index
    %71 = memref.load %arg1[%c0_28, %c2_29] : memref<2x25xf32, #tpu.memory_space<smem>>
    %c0_30 = arith.constant 0 : index
    %c10 = arith.constant 10 : index
    %72 = memref.load %arg1[%c0_30, %c10] : memref<2x25xf32, #tpu.memory_space<smem>>
    %c0_31 = arith.constant 0 : index
    %c18 = arith.constant 18 : index
    %73 = memref.load %arg1[%c0_31, %c18] : memref<2x25xf32, #tpu.memory_space<smem>>
    %74 = vector.broadcast %71 : f32 to vector<16x128xf32>
    %75 = arith.mulf %74, %30 : vector<16x128xf32>
    %76 = vector.broadcast %72 : f32 to vector<16x128xf32>
    %77 = arith.addf %75, %76 : vector<16x128xf32>
    %78 = arith.mulf %77, %77 : vector<16x128xf32>
    %79 = arith.mulf %78, %77 : vector<16x128xf32>
    %cst_32 = arith.constant 4.471500e-02 : f32
    %80 = vector.broadcast %cst_32 : f32 to vector<16x128xf32>
    %81 = arith.mulf %80, %79 : vector<16x128xf32>
    %82 = arith.addf %77, %81 : vector<16x128xf32>
    %cst_33 = arith.constant 0.797884583 : f32
    %83 = vector.broadcast %cst_33 : f32 to vector<16x128xf32>
    %84 = arith.mulf %83, %82 : vector<16x128xf32>
    %85 = math.tanh %84 : vector<16x128xf32>
    %86 = vector.broadcast %73 : f32 to vector<16x128xf32>
    %87 = arith.mulf %86, %77 : vector<16x128xf32>
    %cst_34 = arith.constant 1.000000e+00 : f32
    %88 = vector.broadcast %cst_34 : f32 to vector<16x128xf32>
    %89 = arith.addf %88, %85 : vector<16x128xf32>
    %90 = arith.mulf %87, %89 : vector<16x128xf32>
    %c0_35 = arith.constant 0 : index
    %c3 = arith.constant 3 : index
    %91 = memref.load %arg1[%c0_35, %c3] : memref<2x25xf32, #tpu.memory_space<smem>>
    %c0_36 = arith.constant 0 : index
    %c11 = arith.constant 11 : index
    %92 = memref.load %arg1[%c0_36, %c11] : memref<2x25xf32, #tpu.memory_space<smem>>
    %c0_37 = arith.constant 0 : index
    %c19 = arith.constant 19 : index
    %93 = memref.load %arg1[%c0_37, %c19] : memref<2x25xf32, #tpu.memory_space<smem>>
    %94 = vector.broadcast %91 : f32 to vector<16x128xf32>
    %95 = arith.mulf %94, %30 : vector<16x128xf32>
    %96 = vector.broadcast %92 : f32 to vector<16x128xf32>
    %97 = arith.addf %95, %96 : vector<16x128xf32>
    %98 = arith.mulf %97, %97 : vector<16x128xf32>
    %99 = arith.mulf %98, %97 : vector<16x128xf32>
    %cst_38 = arith.constant 4.471500e-02 : f32
    %100 = vector.broadcast %cst_38 : f32 to vector<16x128xf32>
    %101 = arith.mulf %100, %99 : vector<16x128xf32>
    %102 = arith.addf %97, %101 : vector<16x128xf32>
    %cst_39 = arith.constant 0.797884583 : f32
    %103 = vector.broadcast %cst_39 : f32 to vector<16x128xf32>
    %104 = arith.mulf %103, %102 : vector<16x128xf32>
    %105 = math.tanh %104 : vector<16x128xf32>
    %106 = vector.broadcast %93 : f32 to vector<16x128xf32>
    %107 = arith.mulf %106, %97 : vector<16x128xf32>
    %cst_40 = arith.constant 1.000000e+00 : f32
    %108 = vector.broadcast %cst_40 : f32 to vector<16x128xf32>
    %109 = arith.addf %108, %105 : vector<16x128xf32>
    %110 = arith.mulf %107, %109 : vector<16x128xf32>
    %c0_41 = arith.constant 0 : index
    %c4_42 = arith.constant 4 : index
    %111 = memref.load %arg1[%c0_41, %c4_42] : memref<2x25xf32, #tpu.memory_space<smem>>
    %c0_43 = arith.constant 0 : index
    %c12 = arith.constant 12 : index
    %112 = memref.load %arg1[%c0_43, %c12] : memref<2x25xf32, #tpu.memory_space<smem>>
    %c0_44 = arith.constant 0 : index
    %c20 = arith.constant 20 : index
    %113 = memref.load %arg1[%c0_44, %c20] : memref<2x25xf32, #tpu.memory_space<smem>>
    %114 = vector.broadcast %111 : f32 to vector<16x128xf32>
    %115 = arith.mulf %114, %30 : vector<16x128xf32>
    %116 = vector.broadcast %112 : f32 to vector<16x128xf32>
    %117 = arith.addf %115, %116 : vector<16x128xf32>
    %118 = arith.mulf %117, %117 : vector<16x128xf32>
    %119 = arith.mulf %118, %117 : vector<16x128xf32>
    %cst_45 = arith.constant 4.471500e-02 : f32
    %120 = vector.broadcast %cst_45 : f32 to vector<16x128xf32>
    %121 = arith.mulf %120, %119 : vector<16x128xf32>
    %122 = arith.addf %117, %121 : vector<16x128xf32>
    %cst_46 = arith.constant 0.797884583 : f32
    %123 = vector.broadcast %cst_46 : f32 to vector<16x128xf32>
    %124 = arith.mulf %123, %122 : vector<16x128xf32>
    %125 = math.tanh %124 : vector<16x128xf32>
    %126 = vector.broadcast %113 : f32 to vector<16x128xf32>
    %127 = arith.mulf %126, %117 : vector<16x128xf32>
    %cst_47 = arith.constant 1.000000e+00 : f32
    %128 = vector.broadcast %cst_47 : f32 to vector<16x128xf32>
    %129 = arith.addf %128, %125 : vector<16x128xf32>
    %130 = arith.mulf %127, %129 : vector<16x128xf32>
    %c0_48 = arith.constant 0 : index
    %c5 = arith.constant 5 : index
    %131 = memref.load %arg1[%c0_48, %c5] : memref<2x25xf32, #tpu.memory_space<smem>>
    %c0_49 = arith.constant 0 : index
    %c13 = arith.constant 13 : index
    %132 = memref.load %arg1[%c0_49, %c13] : memref<2x25xf32, #tpu.memory_space<smem>>
    %c0_50 = arith.constant 0 : index
    %c21 = arith.constant 21 : index
    %133 = memref.load %arg1[%c0_50, %c21] : memref<2x25xf32, #tpu.memory_space<smem>>
    %134 = vector.broadcast %131 : f32 to vector<16x128xf32>
    %135 = arith.mulf %134, %30 : vector<16x128xf32>
    %136 = vector.broadcast %132 : f32 to vector<16x128xf32>
    %137 = arith.addf %135, %136 : vector<16x128xf32>
    %138 = arith.mulf %137, %137 : vector<16x128xf32>
    %139 = arith.mulf %138, %137 : vector<16x128xf32>
    %cst_51 = arith.constant 4.471500e-02 : f32
    %140 = vector.broadcast %cst_51 : f32 to vector<16x128xf32>
    %141 = arith.mulf %140, %139 : vector<16x128xf32>
    %142 = arith.addf %137, %141 : vector<16x128xf32>
    %cst_52 = arith.constant 0.797884583 : f32
    %143 = vector.broadcast %cst_52 : f32 to vector<16x128xf32>
    %144 = arith.mulf %143, %142 : vector<16x128xf32>
    %145 = math.tanh %144 : vector<16x128xf32>
    %146 = vector.broadcast %133 : f32 to vector<16x128xf32>
    %147 = arith.mulf %146, %137 : vector<16x128xf32>
    %cst_53 = arith.constant 1.000000e+00 : f32
    %148 = vector.broadcast %cst_53 : f32 to vector<16x128xf32>
    %149 = arith.addf %148, %145 : vector<16x128xf32>
    %150 = arith.mulf %147, %149 : vector<16x128xf32>
    %c0_54 = arith.constant 0 : index
    %c6 = arith.constant 6 : index
    %151 = memref.load %arg1[%c0_54, %c6] : memref<2x25xf32, #tpu.memory_space<smem>>
    %c0_55 = arith.constant 0 : index
    %c14 = arith.constant 14 : index
    %152 = memref.load %arg1[%c0_55, %c14] : memref<2x25xf32, #tpu.memory_space<smem>>
    %c0_56 = arith.constant 0 : index
    %c22 = arith.constant 22 : index
    %153 = memref.load %arg1[%c0_56, %c22] : memref<2x25xf32, #tpu.memory_space<smem>>
    %154 = vector.broadcast %151 : f32 to vector<16x128xf32>
    %155 = arith.mulf %154, %30 : vector<16x128xf32>
    %156 = vector.broadcast %152 : f32 to vector<16x128xf32>
    %157 = arith.addf %155, %156 : vector<16x128xf32>
    %158 = arith.mulf %157, %157 : vector<16x128xf32>
    %159 = arith.mulf %158, %157 : vector<16x128xf32>
    %cst_57 = arith.constant 4.471500e-02 : f32
    %160 = vector.broadcast %cst_57 : f32 to vector<16x128xf32>
    %161 = arith.mulf %160, %159 : vector<16x128xf32>
    %162 = arith.addf %157, %161 : vector<16x128xf32>
    %cst_58 = arith.constant 0.797884583 : f32
    %163 = vector.broadcast %cst_58 : f32 to vector<16x128xf32>
    %164 = arith.mulf %163, %162 : vector<16x128xf32>
    %165 = math.tanh %164 : vector<16x128xf32>
    %166 = vector.broadcast %153 : f32 to vector<16x128xf32>
    %167 = arith.mulf %166, %157 : vector<16x128xf32>
    %cst_59 = arith.constant 1.000000e+00 : f32
    %168 = vector.broadcast %cst_59 : f32 to vector<16x128xf32>
    %169 = arith.addf %168, %165 : vector<16x128xf32>
    %170 = arith.mulf %167, %169 : vector<16x128xf32>
    %c0_60 = arith.constant 0 : index
    %c7 = arith.constant 7 : index
    %171 = memref.load %arg1[%c0_60, %c7] : memref<2x25xf32, #tpu.memory_space<smem>>
    %c0_61 = arith.constant 0 : index
    %c15 = arith.constant 15 : index
    %172 = memref.load %arg1[%c0_61, %c15] : memref<2x25xf32, #tpu.memory_space<smem>>
    %c0_62 = arith.constant 0 : index
    %c23 = arith.constant 23 : index
    %173 = memref.load %arg1[%c0_62, %c23] : memref<2x25xf32, #tpu.memory_space<smem>>
    %174 = vector.broadcast %171 : f32 to vector<16x128xf32>
    %175 = arith.mulf %174, %30 : vector<16x128xf32>
    %176 = vector.broadcast %172 : f32 to vector<16x128xf32>
    %177 = arith.addf %175, %176 : vector<16x128xf32>
    %178 = arith.mulf %177, %177 : vector<16x128xf32>
    %179 = arith.mulf %178, %177 : vector<16x128xf32>
    %cst_63 = arith.constant 4.471500e-02 : f32
    %180 = vector.broadcast %cst_63 : f32 to vector<16x128xf32>
    %181 = arith.mulf %180, %179 : vector<16x128xf32>
    %182 = arith.addf %177, %181 : vector<16x128xf32>
    %cst_64 = arith.constant 0.797884583 : f32
    %183 = vector.broadcast %cst_64 : f32 to vector<16x128xf32>
    %184 = arith.mulf %183, %182 : vector<16x128xf32>
    %185 = math.tanh %184 : vector<16x128xf32>
    %186 = vector.broadcast %173 : f32 to vector<16x128xf32>
    %187 = arith.mulf %186, %177 : vector<16x128xf32>
    %cst_65 = arith.constant 1.000000e+00 : f32
    %188 = vector.broadcast %cst_65 : f32 to vector<16x128xf32>
    %189 = arith.addf %188, %185 : vector<16x128xf32>
    %190 = arith.mulf %187, %189 : vector<16x128xf32>
    %191 = arith.addf %50, %70 : vector<16x128xf32>
    %192 = arith.addf %90, %110 : vector<16x128xf32>
    %193 = arith.addf %130, %150 : vector<16x128xf32>
    %194 = arith.addf %170, %190 : vector<16x128xf32>
    %195 = arith.addf %191, %192 : vector<16x128xf32>
    %196 = arith.addf %193, %194 : vector<16x128xf32>
    %197 = arith.addf %195, %196 : vector<16x128xf32>
    %c0_66 = arith.constant 0 : index
    %c24 = arith.constant 24 : index
    %198 = memref.load %arg1[%c0_66, %c24] : memref<2x25xf32, #tpu.memory_space<smem>>
    %199 = vector.broadcast %198 : f32 to vector<16x128xf32>
    %200 = arith.addf %197, %199 : vector<16x128xf32>
    %201 = arith.addf %0, %200 : vector<16x128xf32>
    %cst_67 = arith.constant dense<0.000000e+00> : vector<16xf32>
    %202 = vector.multi_reduction <add>, %201, %cst_67 [1] : vector<16x128xf32> to vector<16xf32>
    %203 = vector.shape_cast %202 : vector<16xf32> to vector<16x1xf32>
    %cst_68 = arith.constant 1.280000e+02 : f32
    %204 = vector.broadcast %cst_68 : f32 to vector<16x1xf32>
    %205 = arith.divf %203, %204 : vector<16x1xf32>
    %206 = arith.mulf %201, %201 : vector<16x128xf32>
    %cst_69 = arith.constant dense<0.000000e+00> : vector<16xf32>
    %207 = vector.multi_reduction <add>, %206, %cst_69 [1] : vector<16x128xf32> to vector<16xf32>
    %208 = vector.shape_cast %207 : vector<16xf32> to vector<16x1xf32>
    %cst_70 = arith.constant 1.280000e+02 : f32
    %209 = vector.broadcast %cst_70 : f32 to vector<16x1xf32>
    %210 = arith.divf %208, %209 : vector<16x1xf32>
    %211 = arith.mulf %205, %205 : vector<16x1xf32>
    %212 = arith.subf %210, %211 : vector<16x1xf32>
    %cst_71 = arith.constant 0.000000e+00 : f32
    %213 = vector.broadcast %cst_71 : f32 to vector<16x1xf32>
    %214 = arith.maximumf %212, %213 : vector<16x1xf32>
    %215 = vector.broadcast %205 : vector<16x1xf32> to vector<16x128xf32>
    %216 = arith.subf %201, %215 : vector<16x128xf32>
    %cst_72 = arith.constant 9.99999974E-6 : f32
    %217 = vector.broadcast %cst_72 : f32 to vector<16x1xf32>
    %218 = arith.addf %214, %217 : vector<16x1xf32>
    %219 = math.rsqrt %218 : vector<16x1xf32>
    %220 = vector.broadcast %219 : vector<16x1xf32> to vector<16x128xf32>
    %221 = arith.mulf %216, %220 : vector<16x128xf32>
    %222 = vector.broadcast %1 : vector<1x128xf32> to vector<16x128xf32>
    %223 = arith.mulf %221, %222 : vector<16x128xf32>
    %224 = vector.broadcast %2 : vector<1x128xf32> to vector<16x128xf32>
    %225 = arith.addf %223, %224 : vector<16x128xf32>
    %226 = arith.truncf %225 : vector<16x128xf32> to vector<16x128xbf16>
    %cst_73 = arith.constant dense<0.000000e+00> : vector<16x256xf32>
    %227 = tpu.matmul %226, %5, %cst_73 {dimension_numbers = #tpu.dot_dimension_numbers<[1], [0], [0], [1], [0, 0, 1, 1], [], []>} : vector<16x128xbf16>, vector<128x256xbf16>, vector<16x256xf32> -> vector<16x256xf32>
    %228 = vector.broadcast %3 : vector<1x256xf32> to vector<16x256xf32>
    %229 = arith.addf %227, %228 : vector<16x256xf32>
    %cst_74 = arith.constant 5.000000e-01 : f32
    %230 = vector.broadcast %cst_74 : f32 to vector<16x256xf32>
    %231 = arith.mulf %230, %229 : vector<16x256xf32>
    %cst_75 = arith.constant 4.471500e-02 : f32
    %232 = vector.broadcast %cst_75 : f32 to vector<16x256xf32>
    %233 = arith.mulf %232, %229 : vector<16x256xf32>
    %234 = arith.mulf %233, %229 : vector<16x256xf32>
    %235 = arith.mulf %234, %229 : vector<16x256xf32>
    %236 = arith.addf %229, %235 : vector<16x256xf32>
    %cst_76 = arith.constant 0.797884583 : f32
    %237 = vector.broadcast %cst_76 : f32 to vector<16x256xf32>
    %238 = arith.mulf %237, %236 : vector<16x256xf32>
    %239 = math.tanh %238 : vector<16x256xf32>
    %cst_77 = arith.constant 1.000000e+00 : f32
    %240 = vector.broadcast %cst_77 : f32 to vector<16x256xf32>
    %241 = arith.addf %240, %239 : vector<16x256xf32>
    %242 = arith.mulf %231, %241 : vector<16x256xf32>
    %243 = arith.truncf %242 : vector<16x256xf32> to vector<16x256xbf16>
    %cst_78 = arith.constant dense<0.000000e+00> : vector<16x128xf32>
    %244 = tpu.matmul %243, %6, %cst_78 {dimension_numbers = #tpu.dot_dimension_numbers<[1], [0], [0], [1], [0, 0, 1, 1], [], []>} : vector<16x256xbf16>, vector<256x128xbf16>, vector<16x128xf32> -> vector<16x128xf32>
    %245 = vector.broadcast %4 : vector<1x128xf32> to vector<16x128xf32>
    %246 = arith.addf %244, %245 : vector<16x128xf32>
    %247 = arith.addf %201, %246 : vector<16x128xf32>
    %c1_79 = arith.constant 1 : index
    %c0_80 = arith.constant 0 : index
    %248 = vector.load %arg3[%c1_79, %c0_80] : memref<11x256xf32, #tpu.memory_space<vmem>>, vector<1x128xf32>
    %c3_81 = arith.constant 3 : index
    %c0_82 = arith.constant 0 : index
    %249 = vector.load %arg3[%c3_81, %c0_82] : memref<11x256xf32, #tpu.memory_space<vmem>>, vector<1x128xf32>
    %c10_83 = arith.constant 10 : index
    %c0_84 = arith.constant 0 : index
    %250 = vector.load %arg3[%c10_83, %c0_84] : memref<11x256xf32, #tpu.memory_space<vmem>>, vector<1x256xf32>
    %c5_85 = arith.constant 5 : index
    %c0_86 = arith.constant 0 : index
    %251 = vector.load %arg3[%c5_85, %c0_86] : memref<11x256xf32, #tpu.memory_space<vmem>>, vector<1x128xf32>
    %c128 = arith.constant 128 : index
    %c0_87 = arith.constant 0 : index
    %252 = vector.load %arg4[%c128, %c0_87] : memref<640x256xbf16, #tpu.memory_space<vmem>>, vector<128x256xbf16>
    %c256_88 = arith.constant 256 : index
    %c128_89 = arith.constant 128 : index
    %253 = vector.load %arg4[%c256_88, %c128_89] : memref<640x256xbf16, #tpu.memory_space<vmem>>, vector<256x128xbf16>
    %cst_90 = arith.constant dense<0.000000e+00> : vector<16xf32>
    %254 = vector.multi_reduction <add>, %247, %cst_90 [1] : vector<16x128xf32> to vector<16xf32>
    %255 = vector.shape_cast %254 : vector<16xf32> to vector<16x1xf32>
    %cst_91 = arith.constant 1.280000e+02 : f32
    %256 = vector.broadcast %cst_91 : f32 to vector<16x1xf32>
    %257 = arith.divf %255, %256 : vector<16x1xf32>
    %258 = arith.mulf %247, %247 : vector<16x128xf32>
    %cst_92 = arith.constant dense<0.000000e+00> : vector<16xf32>
    %259 = vector.multi_reduction <add>, %258, %cst_92 [1] : vector<16x128xf32> to vector<16xf32>
    %260 = vector.shape_cast %259 : vector<16xf32> to vector<16x1xf32>
    %cst_93 = arith.constant 1.280000e+02 : f32
    %261 = vector.broadcast %cst_93 : f32 to vector<16x1xf32>
    %262 = arith.divf %260, %261 : vector<16x1xf32>
    %263 = arith.mulf %257, %257 : vector<16x1xf32>
    %264 = arith.subf %262, %263 : vector<16x1xf32>
    %cst_94 = arith.constant 0.000000e+00 : f32
    %265 = vector.broadcast %cst_94 : f32 to vector<16x1xf32>
    %266 = arith.maximumf %264, %265 : vector<16x1xf32>
    %267 = vector.broadcast %257 : vector<16x1xf32> to vector<16x128xf32>
    %268 = arith.subf %247, %267 : vector<16x128xf32>
    %cst_95 = arith.constant 9.99999974E-6 : f32
    %269 = vector.broadcast %cst_95 : f32 to vector<16x1xf32>
    %270 = arith.addf %266, %269 : vector<16x1xf32>
    %271 = math.rsqrt %270 : vector<16x1xf32>
    %272 = vector.broadcast %271 : vector<16x1xf32> to vector<16x128xf32>
    %273 = arith.mulf %268, %272 : vector<16x128xf32>
    %274 = vector.broadcast %248 : vector<1x128xf32> to vector<16x128xf32>
    %275 = arith.mulf %273, %274 : vector<16x128xf32>
    %276 = vector.broadcast %249 : vector<1x128xf32> to vector<16x128xf32>
    %277 = arith.addf %275, %276 : vector<16x128xf32>
    %c1_96 = arith.constant 1 : index
    %c0_97 = arith.constant 0 : index
    %278 = memref.load %arg1[%c1_96, %c0_97] : memref<2x25xf32, #tpu.memory_space<smem>>
    %c1_98 = arith.constant 1 : index
    %c8_99 = arith.constant 8 : index
    %279 = memref.load %arg1[%c1_98, %c8_99] : memref<2x25xf32, #tpu.memory_space<smem>>
    %c1_100 = arith.constant 1 : index
    %c16_101 = arith.constant 16 : index
    %280 = memref.load %arg1[%c1_100, %c16_101] : memref<2x25xf32, #tpu.memory_space<smem>>
    %281 = vector.broadcast %278 : f32 to vector<16x128xf32>
    %282 = arith.mulf %281, %277 : vector<16x128xf32>
    %283 = vector.broadcast %279 : f32 to vector<16x128xf32>
    %284 = arith.addf %282, %283 : vector<16x128xf32>
    %285 = arith.mulf %284, %284 : vector<16x128xf32>
    %286 = arith.mulf %285, %284 : vector<16x128xf32>
    %cst_102 = arith.constant 4.471500e-02 : f32
    %287 = vector.broadcast %cst_102 : f32 to vector<16x128xf32>
    %288 = arith.mulf %287, %286 : vector<16x128xf32>
    %289 = arith.addf %284, %288 : vector<16x128xf32>
    %cst_103 = arith.constant 0.797884583 : f32
    %290 = vector.broadcast %cst_103 : f32 to vector<16x128xf32>
    %291 = arith.mulf %290, %289 : vector<16x128xf32>
    %292 = math.tanh %291 : vector<16x128xf32>
    %293 = vector.broadcast %280 : f32 to vector<16x128xf32>
    %294 = arith.mulf %293, %284 : vector<16x128xf32>
    %cst_104 = arith.constant 1.000000e+00 : f32
    %295 = vector.broadcast %cst_104 : f32 to vector<16x128xf32>
    %296 = arith.addf %295, %292 : vector<16x128xf32>
    %297 = arith.mulf %294, %296 : vector<16x128xf32>
    %c1_105 = arith.constant 1 : index
    %c1_106 = arith.constant 1 : index
    %298 = memref.load %arg1[%c1_105, %c1_106] : memref<2x25xf32, #tpu.memory_space<smem>>
    %c1_107 = arith.constant 1 : index
    %c9_108 = arith.constant 9 : index
    %299 = memref.load %arg1[%c1_107, %c9_108] : memref<2x25xf32, #tpu.memory_space<smem>>
    %c1_109 = arith.constant 1 : index
    %c17_110 = arith.constant 17 : index
    %300 = memref.load %arg1[%c1_109, %c17_110] : memref<2x25xf32, #tpu.memory_space<smem>>
    %301 = vector.broadcast %298 : f32 to vector<16x128xf32>
    %302 = arith.mulf %301, %277 : vector<16x128xf32>
    %303 = vector.broadcast %299 : f32 to vector<16x128xf32>
    %304 = arith.addf %302, %303 : vector<16x128xf32>
    %305 = arith.mulf %304, %304 : vector<16x128xf32>
    %306 = arith.mulf %305, %304 : vector<16x128xf32>
    %cst_111 = arith.constant 4.471500e-02 : f32
    %307 = vector.broadcast %cst_111 : f32 to vector<16x128xf32>
    %308 = arith.mulf %307, %306 : vector<16x128xf32>
    %309 = arith.addf %304, %308 : vector<16x128xf32>
    %cst_112 = arith.constant 0.797884583 : f32
    %310 = vector.broadcast %cst_112 : f32 to vector<16x128xf32>
    %311 = arith.mulf %310, %309 : vector<16x128xf32>
    %312 = math.tanh %311 : vector<16x128xf32>
    %313 = vector.broadcast %300 : f32 to vector<16x128xf32>
    %314 = arith.mulf %313, %304 : vector<16x128xf32>
    %cst_113 = arith.constant 1.000000e+00 : f32
    %315 = vector.broadcast %cst_113 : f32 to vector<16x128xf32>
    %316 = arith.addf %315, %312 : vector<16x128xf32>
    %317 = arith.mulf %314, %316 : vector<16x128xf32>
    %c1_114 = arith.constant 1 : index
    %c2_115 = arith.constant 2 : index
    %318 = memref.load %arg1[%c1_114, %c2_115] : memref<2x25xf32, #tpu.memory_space<smem>>
    %c1_116 = arith.constant 1 : index
    %c10_117 = arith.constant 10 : index
    %319 = memref.load %arg1[%c1_116, %c10_117] : memref<2x25xf32, #tpu.memory_space<smem>>
    %c1_118 = arith.constant 1 : index
    %c18_119 = arith.constant 18 : index
    %320 = memref.load %arg1[%c1_118, %c18_119] : memref<2x25xf32, #tpu.memory_space<smem>>
    %321 = vector.broadcast %318 : f32 to vector<16x128xf32>
    %322 = arith.mulf %321, %277 : vector<16x128xf32>
    %323 = vector.broadcast %319 : f32 to vector<16x128xf32>
    %324 = arith.addf %322, %323 : vector<16x128xf32>
    %325 = arith.mulf %324, %324 : vector<16x128xf32>
    %326 = arith.mulf %325, %324 : vector<16x128xf32>
    %cst_120 = arith.constant 4.471500e-02 : f32
    %327 = vector.broadcast %cst_120 : f32 to vector<16x128xf32>
    %328 = arith.mulf %327, %326 : vector<16x128xf32>
    %329 = arith.addf %324, %328 : vector<16x128xf32>
    %cst_121 = arith.constant 0.797884583 : f32
    %330 = vector.broadcast %cst_121 : f32 to vector<16x128xf32>
    %331 = arith.mulf %330, %329 : vector<16x128xf32>
    %332 = math.tanh %331 : vector<16x128xf32>
    %333 = vector.broadcast %320 : f32 to vector<16x128xf32>
    %334 = arith.mulf %333, %324 : vector<16x128xf32>
    %cst_122 = arith.constant 1.000000e+00 : f32
    %335 = vector.broadcast %cst_122 : f32 to vector<16x128xf32>
    %336 = arith.addf %335, %332 : vector<16x128xf32>
    %337 = arith.mulf %334, %336 : vector<16x128xf32>
    %c1_123 = arith.constant 1 : index
    %c3_124 = arith.constant 3 : index
    %338 = memref.load %arg1[%c1_123, %c3_124] : memref<2x25xf32, #tpu.memory_space<smem>>
    %c1_125 = arith.constant 1 : index
    %c11_126 = arith.constant 11 : index
    %339 = memref.load %arg1[%c1_125, %c11_126] : memref<2x25xf32, #tpu.memory_space<smem>>
    %c1_127 = arith.constant 1 : index
    %c19_128 = arith.constant 19 : index
    %340 = memref.load %arg1[%c1_127, %c19_128] : memref<2x25xf32, #tpu.memory_space<smem>>
    %341 = vector.broadcast %338 : f32 to vector<16x128xf32>
    %342 = arith.mulf %341, %277 : vector<16x128xf32>
    %343 = vector.broadcast %339 : f32 to vector<16x128xf32>
    %344 = arith.addf %342, %343 : vector<16x128xf32>
    %345 = arith.mulf %344, %344 : vector<16x128xf32>
    %346 = arith.mulf %345, %344 : vector<16x128xf32>
    %cst_129 = arith.constant 4.471500e-02 : f32
    %347 = vector.broadcast %cst_129 : f32 to vector<16x128xf32>
    %348 = arith.mulf %347, %346 : vector<16x128xf32>
    %349 = arith.addf %344, %348 : vector<16x128xf32>
    %cst_130 = arith.constant 0.797884583 : f32
    %350 = vector.broadcast %cst_130 : f32 to vector<16x128xf32>
    %351 = arith.mulf %350, %349 : vector<16x128xf32>
    %352 = math.tanh %351 : vector<16x128xf32>
    %353 = vector.broadcast %340 : f32 to vector<16x128xf32>
    %354 = arith.mulf %353, %344 : vector<16x128xf32>
    %cst_131 = arith.constant 1.000000e+00 : f32
    %355 = vector.broadcast %cst_131 : f32 to vector<16x128xf32>
    %356 = arith.addf %355, %352 : vector<16x128xf32>
    %357 = arith.mulf %354, %356 : vector<16x128xf32>
    %c1_132 = arith.constant 1 : index
    %c4_133 = arith.constant 4 : index
    %358 = memref.load %arg1[%c1_132, %c4_133] : memref<2x25xf32, #tpu.memory_space<smem>>
    %c1_134 = arith.constant 1 : index
    %c12_135 = arith.constant 12 : index
    %359 = memref.load %arg1[%c1_134, %c12_135] : memref<2x25xf32, #tpu.memory_space<smem>>
    %c1_136 = arith.constant 1 : index
    %c20_137 = arith.constant 20 : index
    %360 = memref.load %arg1[%c1_136, %c20_137] : memref<2x25xf32, #tpu.memory_space<smem>>
    %361 = vector.broadcast %358 : f32 to vector<16x128xf32>
    %362 = arith.mulf %361, %277 : vector<16x128xf32>
    %363 = vector.broadcast %359 : f32 to vector<16x128xf32>
    %364 = arith.addf %362, %363 : vector<16x128xf32>
    %365 = arith.mulf %364, %364 : vector<16x128xf32>
    %366 = arith.mulf %365, %364 : vector<16x128xf32>
    %cst_138 = arith.constant 4.471500e-02 : f32
    %367 = vector.broadcast %cst_138 : f32 to vector<16x128xf32>
    %368 = arith.mulf %367, %366 : vector<16x128xf32>
    %369 = arith.addf %364, %368 : vector<16x128xf32>
    %cst_139 = arith.constant 0.797884583 : f32
    %370 = vector.broadcast %cst_139 : f32 to vector<16x128xf32>
    %371 = arith.mulf %370, %369 : vector<16x128xf32>
    %372 = math.tanh %371 : vector<16x128xf32>
    %373 = vector.broadcast %360 : f32 to vector<16x128xf32>
    %374 = arith.mulf %373, %364 : vector<16x128xf32>
    %cst_140 = arith.constant 1.000000e+00 : f32
    %375 = vector.broadcast %cst_140 : f32 to vector<16x128xf32>
    %376 = arith.addf %375, %372 : vector<16x128xf32>
    %377 = arith.mulf %374, %376 : vector<16x128xf32>
    %c1_141 = arith.constant 1 : index
    %c5_142 = arith.constant 5 : index
    %378 = memref.load %arg1[%c1_141, %c5_142] : memref<2x25xf32, #tpu.memory_space<smem>>
    %c1_143 = arith.constant 1 : index
    %c13_144 = arith.constant 13 : index
    %379 = memref.load %arg1[%c1_143, %c13_144] : memref<2x25xf32, #tpu.memory_space<smem>>
    %c1_145 = arith.constant 1 : index
    %c21_146 = arith.constant 21 : index
    %380 = memref.load %arg1[%c1_145, %c21_146] : memref<2x25xf32, #tpu.memory_space<smem>>
    %381 = vector.broadcast %378 : f32 to vector<16x128xf32>
    %382 = arith.mulf %381, %277 : vector<16x128xf32>
    %383 = vector.broadcast %379 : f32 to vector<16x128xf32>
    %384 = arith.addf %382, %383 : vector<16x128xf32>
    %385 = arith.mulf %384, %384 : vector<16x128xf32>
    %386 = arith.mulf %385, %384 : vector<16x128xf32>
    %cst_147 = arith.constant 4.471500e-02 : f32
    %387 = vector.broadcast %cst_147 : f32 to vector<16x128xf32>
    %388 = arith.mulf %387, %386 : vector<16x128xf32>
    %389 = arith.addf %384, %388 : vector<16x128xf32>
    %cst_148 = arith.constant 0.797884583 : f32
    %390 = vector.broadcast %cst_148 : f32 to vector<16x128xf32>
    %391 = arith.mulf %390, %389 : vector<16x128xf32>
    %392 = math.tanh %391 : vector<16x128xf32>
    %393 = vector.broadcast %380 : f32 to vector<16x128xf32>
    %394 = arith.mulf %393, %384 : vector<16x128xf32>
    %cst_149 = arith.constant 1.000000e+00 : f32
    %395 = vector.broadcast %cst_149 : f32 to vector<16x128xf32>
    %396 = arith.addf %395, %392 : vector<16x128xf32>
    %397 = arith.mulf %394, %396 : vector<16x128xf32>
    %c1_150 = arith.constant 1 : index
    %c6_151 = arith.constant 6 : index
    %398 = memref.load %arg1[%c1_150, %c6_151] : memref<2x25xf32, #tpu.memory_space<smem>>
    %c1_152 = arith.constant 1 : index
    %c14_153 = arith.constant 14 : index
    %399 = memref.load %arg1[%c1_152, %c14_153] : memref<2x25xf32, #tpu.memory_space<smem>>
    %c1_154 = arith.constant 1 : index
    %c22_155 = arith.constant 22 : index
    %400 = memref.load %arg1[%c1_154, %c22_155] : memref<2x25xf32, #tpu.memory_space<smem>>
    %401 = vector.broadcast %398 : f32 to vector<16x128xf32>
    %402 = arith.mulf %401, %277 : vector<16x128xf32>
    %403 = vector.broadcast %399 : f32 to vector<16x128xf32>
    %404 = arith.addf %402, %403 : vector<16x128xf32>
    %405 = arith.mulf %404, %404 : vector<16x128xf32>
    %406 = arith.mulf %405, %404 : vector<16x128xf32>
    %cst_156 = arith.constant 4.471500e-02 : f32
    %407 = vector.broadcast %cst_156 : f32 to vector<16x128xf32>
    %408 = arith.mulf %407, %406 : vector<16x128xf32>
    %409 = arith.addf %404, %408 : vector<16x128xf32>
    %cst_157 = arith.constant 0.797884583 : f32
    %410 = vector.broadcast %cst_157 : f32 to vector<16x128xf32>
    %411 = arith.mulf %410, %409 : vector<16x128xf32>
    %412 = math.tanh %411 : vector<16x128xf32>
    %413 = vector.broadcast %400 : f32 to vector<16x128xf32>
    %414 = arith.mulf %413, %404 : vector<16x128xf32>
    %cst_158 = arith.constant 1.000000e+00 : f32
    %415 = vector.broadcast %cst_158 : f32 to vector<16x128xf32>
    %416 = arith.addf %415, %412 : vector<16x128xf32>
    %417 = arith.mulf %414, %416 : vector<16x128xf32>
    %c1_159 = arith.constant 1 : index
    %c7_160 = arith.constant 7 : index
    %418 = memref.load %arg1[%c1_159, %c7_160] : memref<2x25xf32, #tpu.memory_space<smem>>
    %c1_161 = arith.constant 1 : index
    %c15_162 = arith.constant 15 : index
    %419 = memref.load %arg1[%c1_161, %c15_162] : memref<2x25xf32, #tpu.memory_space<smem>>
    %c1_163 = arith.constant 1 : index
    %c23_164 = arith.constant 23 : index
    %420 = memref.load %arg1[%c1_163, %c23_164] : memref<2x25xf32, #tpu.memory_space<smem>>
    %421 = vector.broadcast %418 : f32 to vector<16x128xf32>
    %422 = arith.mulf %421, %277 : vector<16x128xf32>
    %423 = vector.broadcast %419 : f32 to vector<16x128xf32>
    %424 = arith.addf %422, %423 : vector<16x128xf32>
    %425 = arith.mulf %424, %424 : vector<16x128xf32>
    %426 = arith.mulf %425, %424 : vector<16x128xf32>
    %cst_165 = arith.constant 4.471500e-02 : f32
    %427 = vector.broadcast %cst_165 : f32 to vector<16x128xf32>
    %428 = arith.mulf %427, %426 : vector<16x128xf32>
    %429 = arith.addf %424, %428 : vector<16x128xf32>
    %cst_166 = arith.constant 0.797884583 : f32
    %430 = vector.broadcast %cst_166 : f32 to vector<16x128xf32>
    %431 = arith.mulf %430, %429 : vector<16x128xf32>
    %432 = math.tanh %431 : vector<16x128xf32>
    %433 = vector.broadcast %420 : f32 to vector<16x128xf32>
    %434 = arith.mulf %433, %424 : vector<16x128xf32>
    %cst_167 = arith.constant 1.000000e+00 : f32
    %435 = vector.broadcast %cst_167 : f32 to vector<16x128xf32>
    %436 = arith.addf %435, %432 : vector<16x128xf32>
    %437 = arith.mulf %434, %436 : vector<16x128xf32>
    %438 = arith.addf %297, %317 : vector<16x128xf32>
    %439 = arith.addf %337, %357 : vector<16x128xf32>
    %440 = arith.addf %377, %397 : vector<16x128xf32>
    %441 = arith.addf %417, %437 : vector<16x128xf32>
    %442 = arith.addf %438, %439 : vector<16x128xf32>
    %443 = arith.addf %440, %441 : vector<16x128xf32>
    %444 = arith.addf %442, %443 : vector<16x128xf32>
    %c1_168 = arith.constant 1 : index
    %c24_169 = arith.constant 24 : index
    %445 = memref.load %arg1[%c1_168, %c24_169] : memref<2x25xf32, #tpu.memory_space<smem>>
    %446 = vector.broadcast %445 : f32 to vector<16x128xf32>
    %447 = arith.addf %444, %446 : vector<16x128xf32>
    %448 = arith.addf %247, %447 : vector<16x128xf32>
    %cst_170 = arith.constant dense<0.000000e+00> : vector<16xf32>
    %449 = vector.multi_reduction <add>, %448, %cst_170 [1] : vector<16x128xf32> to vector<16xf32>
    %450 = vector.shape_cast %449 : vector<16xf32> to vector<16x1xf32>
    %cst_171 = arith.constant 1.280000e+02 : f32
    %451 = vector.broadcast %cst_171 : f32 to vector<16x1xf32>
    %452 = arith.divf %450, %451 : vector<16x1xf32>
    %453 = arith.mulf %448, %448 : vector<16x128xf32>
    %cst_172 = arith.constant dense<0.000000e+00> : vector<16xf32>
    %454 = vector.multi_reduction <add>, %453, %cst_172 [1] : vector<16x128xf32> to vector<16xf32>
    %455 = vector.shape_cast %454 : vector<16xf32> to vector<16x1xf32>
    %cst_173 = arith.constant 1.280000e+02 : f32
    %456 = vector.broadcast %cst_173 : f32 to vector<16x1xf32>
    %457 = arith.divf %455, %456 : vector<16x1xf32>
    %458 = arith.mulf %452, %452 : vector<16x1xf32>
    %459 = arith.subf %457, %458 : vector<16x1xf32>
    %cst_174 = arith.constant 0.000000e+00 : f32
    %460 = vector.broadcast %cst_174 : f32 to vector<16x1xf32>
    %461 = arith.maximumf %459, %460 : vector<16x1xf32>
    %462 = vector.broadcast %452 : vector<16x1xf32> to vector<16x128xf32>
    %463 = arith.subf %448, %462 : vector<16x128xf32>
    %cst_175 = arith.constant 9.99999974E-6 : f32
    %464 = vector.broadcast %cst_175 : f32 to vector<16x1xf32>
    %465 = arith.addf %461, %464 : vector<16x1xf32>
    %466 = math.rsqrt %465 : vector<16x1xf32>
    %467 = vector.broadcast %466 : vector<16x1xf32> to vector<16x128xf32>
    %468 = arith.mulf %463, %467 : vector<16x128xf32>
    %469 = vector.broadcast %248 : vector<1x128xf32> to vector<16x128xf32>
    %470 = arith.mulf %468, %469 : vector<16x128xf32>
    %471 = vector.broadcast %249 : vector<1x128xf32> to vector<16x128xf32>
    %472 = arith.addf %470, %471 : vector<16x128xf32>
    %473 = arith.truncf %472 : vector<16x128xf32> to vector<16x128xbf16>
    %cst_176 = arith.constant dense<0.000000e+00> : vector<16x256xf32>
    %474 = tpu.matmul %473, %252, %cst_176 {dimension_numbers = #tpu.dot_dimension_numbers<[1], [0], [0], [1], [0, 0, 1, 1], [], []>} : vector<16x128xbf16>, vector<128x256xbf16>, vector<16x256xf32> -> vector<16x256xf32>
    %475 = vector.broadcast %250 : vector<1x256xf32> to vector<16x256xf32>
    %476 = arith.addf %474, %475 : vector<16x256xf32>
    %cst_177 = arith.constant 5.000000e-01 : f32
    %477 = vector.broadcast %cst_177 : f32 to vector<16x256xf32>
    %478 = arith.mulf %477, %476 : vector<16x256xf32>
    %cst_178 = arith.constant 4.471500e-02 : f32
    %479 = vector.broadcast %cst_178 : f32 to vector<16x256xf32>
    %480 = arith.mulf %479, %476 : vector<16x256xf32>
    %481 = arith.mulf %480, %476 : vector<16x256xf32>
    %482 = arith.mulf %481, %476 : vector<16x256xf32>
    %483 = arith.addf %476, %482 : vector<16x256xf32>
    %cst_179 = arith.constant 0.797884583 : f32
    %484 = vector.broadcast %cst_179 : f32 to vector<16x256xf32>
    %485 = arith.mulf %484, %483 : vector<16x256xf32>
    %486 = math.tanh %485 : vector<16x256xf32>
    %cst_180 = arith.constant 1.000000e+00 : f32
    %487 = vector.broadcast %cst_180 : f32 to vector<16x256xf32>
    %488 = arith.addf %487, %486 : vector<16x256xf32>
    %489 = arith.mulf %478, %488 : vector<16x256xf32>
    %490 = arith.truncf %489 : vector<16x256xf32> to vector<16x256xbf16>
    %cst_181 = arith.constant dense<0.000000e+00> : vector<16x128xf32>
    %491 = tpu.matmul %490, %253, %cst_181 {dimension_numbers = #tpu.dot_dimension_numbers<[1], [0], [0], [1], [0, 0, 1, 1], [], []>} : vector<16x256xbf16>, vector<256x128xbf16>, vector<16x128xf32> -> vector<16x128xf32>
    %492 = vector.broadcast %251 : vector<1x128xf32> to vector<16x128xf32>
    %493 = arith.addf %491, %492 : vector<16x128xf32>
    %494 = arith.addf %448, %493 : vector<16x128xf32>
    %c6_182 = arith.constant 6 : index
    %c0_183 = arith.constant 0 : index
    %495 = vector.load %arg3[%c6_182, %c0_183] : memref<11x256xf32, #tpu.memory_space<vmem>>, vector<1x128xf32>
    %c7_184 = arith.constant 7 : index
    %c0_185 = arith.constant 0 : index
    %496 = vector.load %arg3[%c7_184, %c0_185] : memref<11x256xf32, #tpu.memory_space<vmem>>, vector<1x128xf32>
    %c8_186 = arith.constant 8 : index
    %c0_187 = arith.constant 0 : index
    %497 = vector.load %arg3[%c8_186, %c0_187] : memref<11x256xf32, #tpu.memory_space<vmem>>, vector<1x128xf32>
    %c512 = arith.constant 512 : index
    %c0_188 = arith.constant 0 : index
    %498 = vector.load %arg4[%c512, %c0_188] : memref<640x256xbf16, #tpu.memory_space<vmem>>, vector<128x128xbf16>
    %cst_189 = arith.constant dense<0.000000e+00> : vector<16xf32>
    %499 = vector.multi_reduction <add>, %494, %cst_189 [1] : vector<16x128xf32> to vector<16xf32>
    %500 = vector.shape_cast %499 : vector<16xf32> to vector<16x1xf32>
    %cst_190 = arith.constant 1.280000e+02 : f32
    %501 = vector.broadcast %cst_190 : f32 to vector<16x1xf32>
    %502 = arith.divf %500, %501 : vector<16x1xf32>
    %503 = arith.mulf %494, %494 : vector<16x128xf32>
    %cst_191 = arith.constant dense<0.000000e+00> : vector<16xf32>
    %504 = vector.multi_reduction <add>, %503, %cst_191 [1] : vector<16x128xf32> to vector<16xf32>
    %505 = vector.shape_cast %504 : vector<16xf32> to vector<16x1xf32>
    %cst_192 = arith.constant 1.280000e+02 : f32
    %506 = vector.broadcast %cst_192 : f32 to vector<16x1xf32>
    %507 = arith.divf %505, %506 : vector<16x1xf32>
    %508 = arith.mulf %502, %502 : vector<16x1xf32>
    %509 = arith.subf %507, %508 : vector<16x1xf32>
    %cst_193 = arith.constant 0.000000e+00 : f32
    %510 = vector.broadcast %cst_193 : f32 to vector<16x1xf32>
    %511 = arith.maximumf %509, %510 : vector<16x1xf32>
    %512 = vector.broadcast %502 : vector<16x1xf32> to vector<16x128xf32>
    %513 = arith.subf %494, %512 : vector<16x128xf32>
    %cst_194 = arith.constant 9.99999974E-6 : f32
    %514 = vector.broadcast %cst_194 : f32 to vector<16x1xf32>
    %515 = arith.addf %511, %514 : vector<16x1xf32>
    %516 = math.rsqrt %515 : vector<16x1xf32>
    %517 = vector.broadcast %516 : vector<16x1xf32> to vector<16x128xf32>
    %518 = arith.mulf %513, %517 : vector<16x128xf32>
    %519 = vector.broadcast %495 : vector<1x128xf32> to vector<16x128xf32>
    %520 = arith.mulf %518, %519 : vector<16x128xf32>
    %521 = vector.broadcast %496 : vector<1x128xf32> to vector<16x128xf32>
    %522 = arith.addf %520, %521 : vector<16x128xf32>
    %523 = arith.truncf %522 : vector<16x128xf32> to vector<16x128xbf16>
    %cst_195 = arith.constant dense<0.000000e+00> : vector<16x128xf32>
    %524 = tpu.matmul %523, %498, %cst_195 {dimension_numbers = #tpu.dot_dimension_numbers<[1], [0], [0], [1], [0, 0, 1, 1], [], []>} : vector<16x128xbf16>, vector<128x128xbf16>, vector<16x128xf32> -> vector<16x128xf32>
    %525 = vector.broadcast %497 : vector<1x128xf32> to vector<16x128xf32>
    %526 = arith.addf %524, %525 : vector<16x128xf32>
    %c0_196 = arith.constant 0 : index
    %c0_197 = arith.constant 0 : index
    %527 = vector.load %arg5[%c0_196, %c0_197] : memref<16x128xf32, #tpu.memory_space<vmem>>, vector<16x128xf32>
    tpu.vector_store %arg5[%c0_196, %c0_197], %526 {strides = array<i32>} : memref<16x128xf32, #tpu.memory_space<vmem>>, vector<16x128xf32>,
    return
  }
  func.func @transform_0(%arg0: i32) -> (i32, i32) {
    %c0_i32 = arith.constant 0 : i32
    %c0_i32_0 = arith.constant 0 : i32
    %c0_i32_1 = arith.constant 0 : i32
    return %c0_i32, %c0_i32_0 : i32, i32
  }
  func.func @transform_1(%arg0: i32) -> (i32, i32) {
    %c0_i32 = arith.constant 0 : i32
    %c0_i32_0 = arith.constant 0 : i32
    return %arg0, %c0_i32 : i32, i32
  }
  func.func @transform_2(%arg0: i32) -> (i32, i32) {
    %c0_i32 = arith.constant 0 : i32
    %c0_i32_0 = arith.constant 0 : i32
    %c0_i32_1 = arith.constant 0 : i32
    return %c0_i32, %c0_i32_0 : i32, i32
  }
  func.func @transform_3(%arg0: i32) -> (i32, i32) {
    %c0_i32 = arith.constant 0 : i32
    %c0_i32_0 = arith.constant 0 : i32
    %c0_i32_1 = arith.constant 0 : i32
    return %c0_i32, %c0_i32_0 : i32, i32
  }
  func.func @transform_4(%arg0: i32) -> (i32, i32) {
    %c0_i32 = arith.constant 0 : i32
    %c0_i32_0 = arith.constant 0 : i32
    return %arg0, %c0_i32 : i32, i32
  }
}

</mosaic_0001>

<llo_original>
// kernel: tpu_custom_call.1
$region0: #{tpu_custom_call.1}
  #allocation0 [shape = 'u32[]', space=smem, size = 0x4, offset = 0x4, fixed_abs, tag = 'smem constant byte address 0x4 - core index']
  #allocation1 [shape = 'u32[144,128]{1,0:T(1,128)}', space=vmem, size = 0x12000, scoped, tag = 'internal scratch']
  %s0 = inlined_call_operand.hbm [shape: f32[2,25], index: 0, kind: input, shape index: {}]
  %s1 = inlined_call_operand.hbm [shape: f32[16,128], index: 1, kind: input, shape index: {}]
  %s2 = inlined_call_operand.hbm [shape: f32[11,256], index: 2, kind: input, shape index: {}]
  %s3 = inlined_call_operand.hbm [shape: bf16[640,256], index: 3, kind: input, shape index: {}]
  %s4 = inlined_call_operand.hbm [shape: f32[16,128], index: 4, kind: output, shape index: {}]
  %s5 = sld [smem:[#allocation0]]
  $region42: #{tpu_custom_call.1} parent=0
    _
  %s7 = ssub.s32 1, %s5
  %s8 = scalar_select 0, %s7, %s5
  $region1: #{tpu_custom_call.1} parent=0
    #allocation2 [shape = 'u8[1024]{0}', space=smem, size = 0x400, scoped, tag = 'input window, operand 0, single buffered']
    #allocation3 [shape = 's32[1]{0}', space=sflag, size = 0x4, scoped, tag = 'scoped memory for tpu_custom_call.1']
    #allocation4 [shape = 's32[1]{0}', space=sflag, size = 0x4, scoped, tag = 'scoped memory for tpu_custom_call.1']
    #allocation5 [shape = 's32[1]{0}', space=sflag, size = 0x4, scoped, tag = 'scoped memory for tpu_custom_call.1']
    #allocation6 [shape = 'u8[8192]{0}', space=vmem, size = 0x2000, scoped, tag = 'input window, operand 1, single buffered']
    #allocation7 [shape = 'u8[16384]{0}', space=vmem, size = 0x4000, scoped, tag = 'input window, operand 2, single buffered']
    #allocation8 [shape = 's32[1]{0}', space=sflag, size = 0x4, scoped, tag = 'scoped memory for tpu_custom_call.1']
    #allocation9 [shape = 'u8[327680]{0}', space=vmem, size = 0x50000, scoped, tag = 'input window, operand 3, single buffered']
    #allocation10 [shape = 'u8[8192]{0}', space=vmem, size = 0x2000, scoped, tag = 'output window, operand 0, single buffered']
    %9 = vsyncpa [#allocation5], 0
    %10 = vsyncpa [#allocation3], 0
    %11 = vsyncpa [#allocation8], 0
    %12 = vsyncpa [#allocation4], 0
    // Predicated region
    $region2: #{tpu_custom_call.1} parent=1 // pred_check
      _
    $region3: #{tpu_custom_call.1} parent=1 // pred_check_branch
      %14 = sbr.rel (0) target = $region5
    $region4: #{tpu_custom_call.1} parent=1 // pred_region
      %s16 = ssub.s32 32, 32
      %17 = vsyncadd [#allocation5], %s16
      %20 = dma.hbm_to_smem %s0, 32, [#allocation2], [#allocation5]
    $region5: #{tpu_custom_call.1} parent=1 // pred_fallthru
      _
    // Predicated region
    $region6: #{tpu_custom_call.1} parent=1 // pred_check
      _
    $region7: #{tpu_custom_call.1} parent=1 // pred_check_branch
      %22 = sbr.rel (0) target = $region9
    $region8: #{tpu_custom_call.1} parent=1 // pred_region
      %s24 = ssub.s32 256, 256
      %25 = vsyncadd [#allocation3], %s24
      %s26 = sshll.u32 [#allocation6], 4
      %s27 = int_to_ptr.vmem [resolvable:$true] %s26
      %32 = dma.hbm_to_vmem [thread:$0]  %s1, 256, %s27, [#allocation3], 128, 128, 8
    $region9: #{tpu_custom_call.1} parent=1 // pred_fallthru
      _
    // Predicated region
    $region10: #{tpu_custom_call.1} parent=1 // pred_check
      _
    $region11: #{tpu_custom_call.1} parent=1 // pred_check_branch
      %34 = sbr.rel (0) target = $region13
    $region12: #{tpu_custom_call.1} parent=1 // pred_region
      %s36 = ssub.s32 512, 512
      %37 = vsyncadd [#allocation8], %s36
      %s38 = sshll.u32 [#allocation7], 4
      %s39 = int_to_ptr.vmem [resolvable:$true] %s38
      %44 = dma.hbm_to_vmem [thread:$0]  %s2, 512, %s39, [#allocation8], 256, 256, 16
    $region13: #{tpu_custom_call.1} parent=1 // pred_fallthru
      _
    // Predicated region
    $region14: #{tpu_custom_call.1} parent=1 // pred_check
      _
    $region15: #{tpu_custom_call.1} parent=1 // pred_check_branch
      %46 = sbr.rel (0) target = $region17
    $region16: #{tpu_custom_call.1} parent=1 // pred_region
      %s48 = ssub.s32 10240, 10240
      %49 = vsyncadd [#allocation8], %s48
      %s50 = sshll.u32 [#allocation9], 4
      %s51 = int_to_ptr.vmem [resolvable:$true] %s50
      %56 = dma.hbm_to_vmem [thread:$0]  %s3, 10240, %s51, [#allocation8], 128, 128, 8
    $region17: #{tpu_custom_call.1} parent=1 // pred_fallthru
      _
    // Predicated region
    $region18: #{tpu_custom_call.1} parent=1 // pred_check
      _
    $region19: #{tpu_custom_call.1} parent=1 // pred_check_branch
      %58 = sbr.rel (0) target = $region21
    $region20: #{tpu_custom_call.1} parent=1 // pred_region
      %59 = dma.done [#allocation5], 32
    $region21: #{tpu_custom_call.1} parent=1 // pred_fallthru
      _
    // Predicated region
    $region22: #{tpu_custom_call.1} parent=1 // pred_check
      _
    $region23: #{tpu_custom_call.1} parent=1 // pred_check_branch
      %61 = sbr.rel (0) target = $region25
    $region24: #{tpu_custom_call.1} parent=1 // pred_region
      %62 = dma.done [#allocation3], 256
    $region25: #{tpu_custom_call.1} parent=1 // pred_fallthru
      _
    // Predicated region
    $region26: #{tpu_custom_call.1} parent=1 // pred_check
      _
    $region27: #{tpu_custom_call.1} parent=1 // pred_check_branch
      %64 = sbr.rel (0) target = $region29
    $region28: #{tpu_custom_call.1} parent=1 // pred_region
      %65 = dma.done [#allocation8], 512
    $region29: #{tpu_custom_call.1} parent=1 // pred_fallthru
      _
    // Predicated region
    $region30: #{tpu_custom_call.1} parent=1 // pred_check
      _
    $region31: #{tpu_custom_call.1} parent=1 // pred_check_branch
      %67 = sbr.rel (0) target = $region33
    $region32: #{tpu_custom_call.1} parent=1 // pred_region
      %68 = dma.done [#allocation8], 10240
    $region33: #{tpu_custom_call.1} parent=1 // pred_fallthru
      _
    %69 = sfence
    %v71 = vld [vmem:[#allocation6] sm:$0xff]
    %v72 = vld [vmem:[#allocation6 + $0x8] sm:$0xff]
    %v73 = vld [vmem:[#allocation7] ss:$0 sm:$0xff]
    %v74 = vld [vmem:[#allocation7 + $0x2] ss:$0 sm:$0xff]
    %s75 = scalar_lea.vmem [#allocation7], 17
    %v76 = vld [vmem:[%s75] ss:$8 sm:$0x3]
    %v77 = vld [vmem:[#allocation7 + $0x4] ss:$0 sm:$0xff]
    %v78 = vld [vmem:[#allocation9] sm:$0xff]
    %v79 = vld [vmem:[#allocation9 + $0x8] sm:$0xff]
    %v80 = vld [vmem:[#allocation9 + $0x10] sm:$0xff]
    %v81 = vld [vmem:[#allocation9 + $0x18] sm:$0xff]
    %v82 = vld [vmem:[#allocation9 + $0x20] sm:$0xff]
    %v83 = vld [vmem:[#allocation9 + $0x28] sm:$0xff]
    %v84 = vld [vmem:[#allocation9 + $0x30] sm:$0xff]
    %v85 = vld [vmem:[#allocation9 + $0x38] sm:$0xff]
    %v86 = vld [vmem:[#allocation9 + $0x40] sm:$0xff]
    %v87 = vld [vmem:[#allocation9 + $0x48] sm:$0xff]
    %v88 = vld [vmem:[#allocation9 + $0x50] sm:$0xff]
    %v89 = vld [vmem:[#allocation9 + $0x58] sm:$0xff]
    %v90 = vld [vmem:[#allocation9 + $0x60] sm:$0xff]
    %v91 = vld [vmem:[#allocation9 + $0x68] sm:$0xff]
    %v92 = vld [vmem:[#allocation9 + $0x70] sm:$0xff]
    %v93 = vld [vmem:[#allocation9 + $0x78] sm:$0xff]
    %v94 = vld [vmem:[#allocation9 + $0x100] sm:$0xf]
    %v95 = vld [vmem:[#allocation9 + $0x108] sm:$0xf]
    %v96 = vld [vmem:[#allocation9 + $0x110] sm:$0xf]
    %v97 = vld [vmem:[#allocation9 + $0x118] sm:$0xf]
    %v98 = vld [vmem:[#allocation9 + $0x120] sm:$0xf]
    %v99 = vld [vmem:[#allocation9 + $0x128] sm:$0xf]
    %v100 = vld [vmem:[#allocation9 + $0x130] sm:$0xf]
    %v101 = vld [vmem:[#allocation9 + $0x138] sm:$0xf]
    %v102 = vld [vmem:[#allocation9 + $0x140] sm:$0xf]
    %v103 = vld [vmem:[#allocation9 + $0x148] sm:$0xf]
    %v104 = vld [vmem:[#allocation9 + $0x150] sm:$0xf]
    %v105 = vld [vmem:[#allocation9 + $0x158] sm:$0xf]
    %v106 = vld [vmem:[#allocation9 + $0x160] sm:$0xf]
    %v107 = vld [vmem:[#allocation9 + $0x168] sm:$0xf]
    %v108 = vld [vmem:[#allocation9 + $0x170] sm:$0xf]
    %v109 = vld [vmem:[#allocation9 + $0x178] sm:$0xf]
    %v110 = vld [vmem:[#allocation9 + $0x180] sm:$0xf]
    %v111 = vld [vmem:[#allocation9 + $0x188] sm:$0xf]
    %v112 = vld [vmem:[#allocation9 + $0x190] sm:$0xf]
    %v113 = vld [vmem:[#allocation9 + $0x198] sm:$0xf]
    %v114 = vld [vmem:[#allocation9 + $0x1a0] sm:$0xf]
    %v115 = vld [vmem:[#allocation9 + $0x1a8] sm:$0xf]
    %v116 = vld [vmem:[#allocation9 + $0x1b0] sm:$0xf]
    %v117 = vld [vmem:[#allocation9 + $0x1b8] sm:$0xf]
    %v118 = vld [vmem:[#allocation9 + $0x1c0] sm:$0xf]
    %v119 = vld [vmem:[#allocation9 + $0x1c8] sm:$0xf]
    %v120 = vld [vmem:[#allocation9 + $0x1d0] sm:$0xf]
    %v121 = vld [vmem:[#allocation9 + $0x1d8] sm:$0xf]
    %v122 = vld [vmem:[#allocation9 + $0x1e0] sm:$0xf]
    %v123 = vld [vmem:[#allocation9 + $0x1e8] sm:$0xf]
    %v124 = vld [vmem:[#allocation9 + $0x1f0] sm:$0xf]
    %v125 = vld [vmem:[#allocation9 + $0x1f8] sm:$0xf]
    %126 = vadd.xlane.f32.xlu0 %v71
    %v127 = vpop.xlane.xlu0 %126
    %128 = vadd.xlane.f32.xlu0 %v72
    %v129 = vpop.xlane.xlu0 %128
    %v130 = vrcp.pop 128.0
    %v131 = vmul.f32 %v127, %v130
    %v132 = vmul.f32 %v129, %v130
    %v133 = vmul.f32 %v71, %v71
    %v134 = vmul.f32 %v72, %v72
    %135 = vadd.xlane.f32.xlu0 %v133
    %v136 = vpop.xlane.xlu0 %135
    %137 = vadd.xlane.f32.xlu0 %v134
    %v138 = vpop.xlane.xlu0 %137
    %v139 = vmul.f32 %v136, %v130
    %v140 = vmul.f32 %v138, %v130
    %v141 = vmul.f32 %v131, %v131
    %v142 = vmul.f32 %v132, %v132
    %v143 = vsub.f32 %v139, %v141
    %v144 = vsub.f32 %v140, %v142
    %v145 = vmax.f32 %v143, 0.0
    %v146 = vmax.f32 %v144, 0.0
    %v147 = vsub.f32 %v71, %v131
    %v148 = vsub.f32 %v72, %v132
    %v149 = vadd.f32 %v145, 1e-05
    %v150 = vadd.f32 %v146, 1e-05
    %v151 = vrsqrt.pop %v149
    %v152 = vrsqrt.pop %v150
    %v153 = vmul.f32 %v147, %v151
    %v154 = vmul.f32 %v148, %v152
    %v155 = vmul.f32 %v153, %v73
    %v156 = vmul.f32 %v154, %v73
    %v157 = vadd.f32 %v155, %v74
    %v158 = vadd.f32 %v156, %v74
    %s159 = sld [smem:[#allocation2]]
    %s160 = sld [smem:[#allocation2 + $0x8]]
    %s161 = sld [smem:[#allocation2 + $0x10]]
    %v162 = vstv %s159
    %v163 = vmul.f32 %v162, %v157
    %v164 = vmul.f32 %v162, %v158
    %v165 = vstv %s160
    %v166 = vadd.f32 %v163, %v165
    %v167 = vadd.f32 %v164, %v165
    %v168 = vmul.f32 %v166, %v166
    %v169 = vmul.f32 %v167, %v167
    %v170 = vmul.f32 %v168, %v166
    %v171 = vmul.f32 %v169, %v167
    %v172 = vmul.f32 %v170, 0.044715
    %v173 = vmul.f32 %v171, 0.044715
    %v174 = vadd.f32 %v166, %v172
    %v175 = vadd.f32 %v167, %v173
    %v176 = vmul.f32 %v174, 0.7978846
    %v177 = vmul.f32 %v175, 0.7978846
    %v178 = vtanh.pop %v176
    %v179 = vtanh.pop %v177
    %v180 = vstv %s161
    %v181 = vmul.f32 %v180, %v166
    %v182 = vmul.f32 %v180, %v167
    %v183 = vadd.f32 %v178, 1.0
    %v184 = vadd.f32 %v179, 1.0
    %v185 = vmul.f32 %v181, %v183
    %v186 = vmul.f32 %v182, %v184
    %s187 = sld [smem:[#allocation2 + $0x1]]
    %s188 = sld [smem:[#allocation2 + $0x9]]
    %s189 = sld [smem:[#allocation2 + $0x11]]
    %v190 = vstv %s187
    %v191 = vmul.f32 %v190, %v157
    %v192 = vmul.f32 %v190, %v158
    %v193 = vstv %s188
    %v194 = vadd.f32 %v191, %v193
    %v195 = vadd.f32 %v192, %v193
    %v196 = vmul.f32 %v194, %v194
    %v197 = vmul.f32 %v195, %v195
    %v198 = vmul.f32 %v196, %v194
    %v199 = vmul.f32 %v197, %v195
    %v200 = vmul.f32 %v198, 0.044715
    %v201 = vmul.f32 %v199, 0.044715
    %v202 = vadd.f32 %v194, %v200
    %v203 = vadd.f32 %v195, %v201
    %v204 = vmul.f32 %v202, 0.7978846
    %v205 = vmul.f32 %v203, 0.7978846
    %v206 = vtanh.pop %v204
    %v207 = vtanh.pop %v205
    %v208 = vstv %s189
    %v209 = vmul.f32 %v208, %v194
    %v210 = vmul.f32 %v208, %v195
    %v211 = vadd.f32 %v206, 1.0
    %v212 = vadd.f32 %v207, 1.0
    %v213 = vmul.f32 %v209, %v211
    %v214 = vmul.f32 %v210, %v212
    %s215 = sld [smem:[#allocation2 + $0x2]]
    %s216 = sld [smem:[#allocation2 + $0xa]]
    %s217 = sld [smem:[#allocation2 + $0x12]]
    %v218 = vstv %s215
    %v219 = vmul.f32 %v218, %v157
    %v220 = vmul.f32 %v218, %v158
    %v221 = vstv %s216
    %v222 = vadd.f32 %v219, %v221
    %v223 = vadd.f32 %v220, %v221
    %v224 = vmul.f32 %v222, %v222
    %v225 = vmul.f32 %v223, %v223
    %v226 = vmul.f32 %v224, %v222
    %v227 = vmul.f32 %v225, %v223
    %v228 = vmul.f32 %v226, 0.044715
    %v229 = vmul.f32 %v227, 0.044715
    %v230 = vadd.f32 %v222, %v228
    %v231 = vadd.f32 %v223, %v229
    %v232 = vmul.f32 %v230, 0.7978846
    %v233 = vmul.f32 %v231, 0.7978846
    %v234 = vtanh.pop %v232
    %v235 = vtanh.pop %v233
    %v236 = vstv %s217
    %v237 = vmul.f32 %v236, %v222
    %v238 = vmul.f32 %v236, %v223
    %v239 = vadd.f32 %v234, 1.0
    %v240 = vadd.f32 %v235, 1.0
    %v241 = vmul.f32 %v237, %v239
    %v242 = vmul.f32 %v238, %v240
    %s243 = sld [smem:[#allocation2 + $0x3]]
    %s244 = sld [smem:[#allocation2 + $0xb]]
    %s245 = sld [smem:[#allocation2 + $0x13]]
    %v246 = vstv %s243
    %v247 = vmul.f32 %v246, %v157
    %v248 = vmul.f32 %v246, %v158
    %v249 = vstv %s244
    %v250 = vadd.f32 %v247, %v249
    %v251 = vadd.f32 %v248, %v249
    %v252 = vmul.f32 %v250, %v250
    %v253 = vmul.f32 %v251, %v251
    %v254 = vmul.f32 %v252, %v250
    %v255 = vmul.f32 %v253, %v251
    %v256 = vmul.f32 %v254, 0.044715
    %v257 = vmul.f32 %v255, 0.044715
    %v258 = vadd.f32 %v250, %v256
    %v259 = vadd.f32 %v251, %v257
    %v260 = vmul.f32 %v258, 0.7978846
    %v261 = vmul.f32 %v259, 0.7978846
    %v262 = vtanh.pop %v260
    %v263 = vtanh.pop %v261
    %v264 = vstv %s245
    %v265 = vmul.f32 %v264, %v250
    %v266 = vmul.f32 %v264, %v251
    %v267 = vadd.f32 %v262, 1.0
    %v268 = vadd.f32 %v263, 1.0
    %v269 = vmul.f32 %v265, %v267
    %v270 = vmul.f32 %v266, %v268
    %s271 = sld [smem:[#allocation2 + $0x4]]
    %s272 = sld [smem:[#allocation2 + $0xc]]
    %s273 = sld [smem:[#allocation2 + $0x14]]
    %v274 = vstv %s271
    %v275 = vmul.f32 %v274, %v157
    %v276 = vmul.f32 %v274, %v158
    %v277 = vstv %s272
    %v278 = vadd.f32 %v275, %v277
    %v279 = vadd.f32 %v276, %v277
    %v280 = vmul.f32 %v278, %v278
    %v281 = vmul.f32 %v279, %v279
    %v282 = vmul.f32 %v280, %v278
    %v283 = vmul.f32 %v281, %v279
    %v284 = vmul.f32 %v282, 0.044715
    %v285 = vmul.f32 %v283, 0.044715
    %v286 = vadd.f32 %v278, %v284
    %v287 = vadd.f32 %v279, %v285
    %v288 = vmul.f32 %v286, 0.7978846
    %v289 = vmul.f32 %v287, 0.7978846
    %v290 = vtanh.pop %v288
    %v291 = vtanh.pop %v289
    %v292 = vstv %s273
    %v293 = vmul.f32 %v292, %v278
    %v294 = vmul.f32 %v292, %v279
    %v295 = vadd.f32 %v290, 1.0
    %v296 = vadd.f32 %v291, 1.0
    %v297 = vmul.f32 %v293, %v295
    %v298 = vmul.f32 %v294, %v296
    %s299 = sld [smem:[#allocation2 + $0x5]]
    %s300 = sld [smem:[#allocation2 + $0xd]]
    %s301 = sld [smem:[#allocation2 + $0x15]]
    %v302 = vstv %s299
    %v303 = vmul.f32 %v302, %v157
    %v304 = vmul.f32 %v302, %v158
    %v305 = vstv %s300
    %v306 = vadd.f32 %v303, %v305
    %v307 = vadd.f32 %v304, %v305
    %v308 = vmul.f32 %v306, %v306
    %v309 = vmul.f32 %v307, %v307
    %v310 = vmul.f32 %v308, %v306
    %v311 = vmul.f32 %v309, %v307
    %v312 = vmul.f32 %v310, 0.044715
    %v313 = vmul.f32 %v311, 0.044715
    %v314 = vadd.f32 %v306, %v312
    %v315 = vadd.f32 %v307, %v313
    %v316 = vmul.f32 %v314, 0.7978846
    %v317 = vmul.f32 %v315, 0.7978846
    %v318 = vtanh.pop %v316
    %v319 = vtanh.pop %v317
    %v320 = vstv %s301
    %v321 = vmul.f32 %v320, %v306
    %v322 = vmul.f32 %v320, %v307
    %v323 = vadd.f32 %v318, 1.0
    %v324 = vadd.f32 %v319, 1.0
    %v325 = vmul.f32 %v321, %v323
    %v326 = vmul.f32 %v322, %v324
    %s327 = sld [smem:[#allocation2 + $0x6]]
    %s328 = sld [smem:[#allocation2 + $0xe]]
    %s329 = sld [smem:[#allocation2 + $0x16]]
    %v330 = vstv %s327
    %v331 = vmul.f32 %v330, %v157
    %v332 = vmul.f32 %v330, %v158
    %v333 = vstv %s328
    %v334 = vadd.f32 %v331, %v333
    %v335 = vadd.f32 %v332, %v333
    %v336 = vmul.f32 %v334, %v334
    %v337 = vmul.f32 %v335, %v335
    %v338 = vmul.f32 %v336, %v334
    %v339 = vmul.f32 %v337, %v335
    %v340 = vmul.f32 %v338, 0.044715
    %v341 = vmul.f32 %v339, 0.044715
    %v342 = vadd.f32 %v334, %v340
    %v343 = vadd.f32 %v335, %v341
    %v344 = vmul.f32 %v342, 0.7978846
    %v345 = vmul.f32 %v343, 0.7978846
    %v346 = vtanh.pop %v344
    %v347 = vtanh.pop %v345
    %v348 = vstv %s329
    %v349 = vmul.f32 %v348, %v334
    %v350 = vmul.f32 %v348, %v335
    %v351 = vadd.f32 %v346, 1.0
    %v352 = vadd.f32 %v347, 1.0
    %v353 = vmul.f32 %v349, %v351
    %v354 = vmul.f32 %v350, %v352
    %s355 = sld [smem:[#allocation2 + $0x7]]
    %s356 = sld [smem:[#allocation2 + $0xf]]
    %s357 = sld [smem:[#allocation2 + $0x17]]
    %v358 = vstv %s355
    %v359 = vmul.f32 %v358, %v157
    %v360 = vmul.f32 %v358, %v158
    %v361 = vstv %s356
    %v362 = vadd.f32 %v359, %v361
    %v363 = vadd.f32 %v360, %v361
    %v364 = vmul.f32 %v362, %v362
    %v365 = vmul.f32 %v363, %v363
    %v366 = vmul.f32 %v364, %v362
    %v367 = vmul.f32 %v365, %v363
    %v368 = vmul.f32 %v366, 0.044715
    %v369 = vmul.f32 %v367, 0.044715
    %v370 = vadd.f32 %v362, %v368
    %v371 = vadd.f32 %v363, %v369
    %v372 = vmul.f32 %v370, 0.7978846
    %v373 = vmul.f32 %v371, 0.7978846
    %v374 = vtanh.pop %v372
    %v375 = vtanh.pop %v373
    %v376 = vstv %s357
    %v377 = vmul.f32 %v376, %v362
    %v378 = vmul.f32 %v376, %v363
    %v379 = vadd.f32 %v374, 1.0
    %v380 = vadd.f32 %v375, 1.0
    %v381 = vmul.f32 %v377, %v379
    %v382 = vmul.f32 %v378, %v380
    %v383 = vadd.f32 %v185, %v213
    %v384 = vadd.f32 %v186, %v214
    %v385 = vadd.f32 %v241, %v269
    %v386 = vadd.f32 %v242, %v270
    %v387 = vadd.f32 %v297, %v325
    %v388 = vadd.f32 %v298, %v326
    %v389 = vadd.f32 %v353, %v381
    %v390 = vadd.f32 %v354, %v382
    %v391 = vadd.f32 %v383, %v385
    %v392 = vadd.f32 %v384, %v386
    %v393 = vadd.f32 %v387, %v389
    %v394 = vadd.f32 %v388, %v390
    %v395 = vadd.f32 %v391, %v393
    %v396 = vadd.f32 %v392, %v394
    %s397 = sld [smem:[#allocation2 + $0x18]]
    %v398 = vstv %s397
    %v399 = vadd.f32 %v395, %v398
    %v400 = vadd.f32 %v396, %v398
    %v401 = vadd.f32 %v71, %v399
    %v402 = vadd.f32 %v72, %v400
    %403 = vadd.xlane.f32.xlu0 %v401
    %v404 = vpop.xlane.xlu0 %403
    %405 = vadd.xlane.f32.xlu0 %v402
    %v406 = vpop.xlane.xlu0 %405
    %v407 = vmul.f32 %v404, %v130
    %v408 = vmul.f32 %v406, %v130
    %v409 = vmul.f32 %v401, %v401
    %v410 = vmul.f32 %v402, %v402
    %411 = vadd.xlane.f32.xlu0 %v409
    %v412 = vpop.xlane.xlu0 %411
    %413 = vadd.xlane.f32.xlu0 %v410
    %v414 = vpop.xlane.xlu0 %413
    %v415 = vmul.f32 %v412, %v130
    %v416 = vmul.f32 %v414, %v130
    %v417 = vmul.f32 %v407, %v407
    %v418 = vmul.f32 %v408, %v408
    %v419 = vsub.f32 %v415, %v417
    %v420 = vsub.f32 %v416, %v418
    %v421 = vmax.f32 %v419, 0.0
    %v422 = vmax.f32 %v420, 0.0
    %v423 = vsub.f32 %v401, %v407
    %v424 = vsub.f32 %v402, %v408
    %v425 = vadd.f32 %v421, 1e-05
    %v426 = vadd.f32 %v422, 1e-05
    %v427 = vrsqrt.pop %v425
    %v428 = vrsqrt.pop %v426
    %v429 = vmul.f32 %v423, %v427
    %v430 = vmul.f32 %v424, %v428
    %v431 = vmul.f32 %v429, %v73
    %v432 = vmul.f32 %v430, %v73
    %v433 = vadd.f32 %v431, %v74
    %v434 = vadd.f32 %v432, %v74
    %v435 = vpack.c.bf16 %v434, %v433
    %v437 = vlaneseq
    %v438 = vshrl.u32 %v437, 7
    %v439 = vsub.s32 0, %v438
    %v440 = vrot.slane %v76, %v439
    %v441 = vlaneseq
    %v442 = vshrl.u32 %v441, 7
    %v443 = vsub.s32 1, %v442
    %v444 = vrot.slane %v76, %v443
    %v463 = vunpack.c.l.b16 %v78
    %v464 = vunpack.c.h.b16 %v78
    %v465 = vunpack.c.l.b16 %v79
    %v466 = vunpack.c.h.b16 %v79
    %v467 = vunpack.c.l.b16 %v80
    %v468 = vunpack.c.h.b16 %v80
    %v469 = vunpack.c.l.b16 %v81
    %v470 = vunpack.c.h.b16 %v81
    %v471 = vunpack.c.l.b16 %v82
    %v472 = vunpack.c.h.b16 %v82
    %v473 = vunpack.c.l.b16 %v83
    %v474 = vunpack.c.h.b16 %v83
    %v475 = vunpack.c.l.b16 %v84
    %v476 = vunpack.c.h.b16 %v84
    %v477 = vunpack.c.l.b16 %v85
    %v478 = vunpack.c.h.b16 %v85
    %v479 = vunpack.c.l.b16 %v86
    %v480 = vunpack.c.h.b16 %v86
    %v481 = vunpack.c.l.b16 %v87
    %v482 = vunpack.c.h.b16 %v87
    %v483 = vunpack.c.l.b16 %v88
    %v484 = vunpack.c.h.b16 %v88
    %v485 = vunpack.c.l.b16 %v89
    %v486 = vunpack.c.h.b16 %v89
    %v487 = vunpack.c.l.b16 %v90
    %v488 = vunpack.c.h.b16 %v90
    %v489 = vunpack.c.l.b16 %v91
    %v490 = vunpack.c.h.b16 %v91
    %v491 = vunpack.c.l.b16 %v92
    %v492 = vunpack.c.h.b16 %v92
    %v493 = vunpack.c.l.b16 %v93
    %v494 = vunpack.c.h.b16 %v93
    %v495 = vpack.c.b16 %v465, %v463
    %v496 = vpack.c.b16 %v466, %v464
    %v497 = vpack.c.b16 %v469, %v467
    %v498 = vpack.c.b16 %v470, %v468
    %v499 = vpack.c.b16 %v473, %v471
    %v500 = vpack.c.b16 %v474, %v472
    %v501 = vpack.c.b16 %v477, %v475
    %v502 = vpack.c.b16 %v478, %v476
    %v503 = vpack.c.b16 %v481, %v479
    %v504 = vpack.c.b16 %v482, %v480
    %v505 = vpack.c.b16 %v485, %v483
    %v506 = vpack.c.b16 %v486, %v484
    %v507 = vpack.c.b16 %v489, %v487
    %v508 = vpack.c.b16 %v490, %v488
    %v509 = vpack.c.b16 %v493, %v491
    %v510 = vpack.c.b16 %v494, %v492
    %527 = vmatprep.subr.bf16.mxu0 %v510
    %528 = vmatpush1.bf16.msra.mxu0 %v509
    %529 = vmatprep.subr.bf16.mxu0 %v508
    %530 = vmatpush1.bf16.msra.mxu0 %v507
    %531 = vmatprep.subr.bf16.mxu0 %v506
    %532 = vmatpush1.bf16.msra.mxu0 %v505
    %533 = vmatprep.subr.bf16.mxu0 %v504
    %534 = vmatpush1.bf16.msra.mxu0 %v503
    %535 = vmatprep.subr.bf16.mxu0 %v502
    %536 = vmatpush1.bf16.msra.mxu0 %v501
    %537 = vmatprep.subr.bf16.mxu0 %v500
    %538 = vmatpush1.bf16.msra.mxu0 %v499
    %539 = vmatprep.subr.bf16.mxu0 %v498
    %540 = vmatpush1.bf16.msra.mxu0 %v497
    %541 = vmatprep.subr.bf16.mxu0 %v496
    %542 = vmatpush1.bf16.msra.mxu0 %v495
    %543 = vmatprep.subr.bf16.mxu0 0
    %544 = vmatpush2.bf16.msra.mxu0 0
    %545 = vmatprep.subr.bf16.mxu0 0
    %546 = vmatpush2.bf16.msra.mxu0 0
    %547 = vmatprep.subr.bf16.mxu0 0
    %548 = vmatpush2.bf16.msra.mxu0 0
    %549 = vmatprep.subr.bf16.mxu0 0
    %550 = vmatpush2.bf16.msra.mxu0 0
    %551 = vmatprep.subr.bf16.mxu0 0
    %552 = vmatpush2.bf16.msra.mxu0 0
    %553 = vmatprep.subr.bf16.mxu0 0
    %554 = vmatpush2.bf16.msra.mxu0 0
    %555 = vmatprep.subr.bf16.mxu0 0
    %556 = vmatpush2.bf16.msra.mxu0 0
    %557 = vmatprep.subr.bf16.mxu0 0
    %558 = vmatpush2.bf16.msra.mxu0 0
    %559 = vmatprep.mubr.bf16.mxu0 0
    %560 = vmatmul.mubr.bf16.gmra.mxu0 %v435
    %v561 = vpop.f32.mrf.mxu0
    %v562 = vadd.f32 %v440, %v561
    %v563 = vpop.f32.mrf.mxu0
    %v564 = vadd.f32 %v444, %v563
    %v565 = vpop.f32.mrf.mxu0
    %v566 = vadd.f32 %v440, %v565
    %v567 = vpop.f32.mrf.mxu0
    %v568 = vadd.f32 %v444, %v567
    %569 = vdwg.mxu0
    %v570 = vmul.f32 %v562, 0.5
    %v571 = vmul.f32 %v564, 0.5
    %v572 = vmul.f32 %v566, 0.5
    %v573 = vmul.f32 %v568, 0.5
    %v574 = vmul.f32 %v562, 0.044715
    %v575 = vmul.f32 %v564, 0.044715
    %v576 = vmul.f32 %v566, 0.044715
    %v577 = vmul.f32 %v568, 0.044715
    %v578 = vmul.f32 %v574, %v562
    %v579 = vmul.f32 %v575, %v564
    %v580 = vmul.f32 %v576, %v566
    %v581 = vmul.f32 %v577, %v568
    %v582 = vmul.f32 %v578, %v562
    %v583 = vmul.f32 %v579, %v564
    %v584 = vmul.f32 %v580, %v566
    %v585 = vmul.f32 %v581, %v568
    %v586 = vadd.f32 %v562, %v582
    %v587 = vadd.f32 %v564, %v583
    %v588 = vadd.f32 %v566, %v584
    %v589 = vadd.f32 %v568, %v585
    %v590 = vmul.f32 %v586, 0.7978846
    %v591 = vmul.f32 %v587, 0.7978846
    %v592 = vmul.f32 %v588, 0.7978846
    %v593 = vmul.f32 %v589, 0.7978846
    %v594 = vtanh.pop %v590
    %v595 = vtanh.pop %v591
    %v596 = vtanh.pop %v592
    %v597 = vtanh.pop %v593
    %v598 = vadd.f32 %v594, 1.0
    %v599 = vadd.f32 %v595, 1.0
    %v600 = vadd.f32 %v596, 1.0
    %v601 = vadd.f32 %v597, 1.0
    %v602 = vmul.f32 %v570, %v598
    %v603 = vmul.f32 %v571, %v599
    %v604 = vmul.f32 %v572, %v600
    %v605 = vmul.f32 %v573, %v601
    %v606 = vpack.c.bf16 %v604, %v602
    %v607 = vpack.c.bf16 %v605, %v603
    %v640 = vunpack.c.l.b16 %v94
    %v641 = vunpack.c.l.b16 %v95
    %v642 = vunpack.c.l.b16 %v96
    %v643 = vunpack.c.l.b16 %v97
    %v644 = vunpack.c.l.b16 %v98
    %v645 = vunpack.c.l.b16 %v99
    %v646 = vunpack.c.l.b16 %v100
    %v647 = vunpack.c.l.b16 %v101
    %v648 = vunpack.c.l.b16 %v102
    %v649 = vunpack.c.l.b16 %v103
    %v650 = vunpack.c.l.b16 %v104
    %v651 = vunpack.c.l.b16 %v105
    %v652 = vunpack.c.l.b16 %v106
    %v653 = vunpack.c.l.b16 %v107
    %v654 = vunpack.c.l.b16 %v108
    %v655 = vunpack.c.l.b16 %v109
    %v656 = vunpack.c.l.b16 %v110
    %v657 = vunpack.c.l.b16 %v111
    %v658 = vunpack.c.l.b16 %v112
    %v659 = vunpack.c.l.b16 %v113
    %v660 = vunpack.c.l.b16 %v114
    %v661 = vunpack.c.l.b16 %v115
    %v662 = vunpack.c.l.b16 %v116
    %v663 = vunpack.c.l.b16 %v117
    %v664 = vunpack.c.l.b16 %v118
    %v665 = vunpack.c.l.b16 %v119
    %v666 = vunpack.c.l.b16 %v120
    %v667 = vunpack.c.l.b16 %v121
    %v668 = vunpack.c.l.b16 %v122
    %v669 = vunpack.c.l.b16 %v123
    %v670 = vunpack.c.l.b16 %v124
    %v671 = vunpack.c.l.b16 %v125
    %v672 = vpack.c.b16 %v641, %v640
    %v673 = vpack.c.b16 %v643, %v642
    %v674 = vpack.c.b16 %v645, %v644
    %v675 = vpack.c.b16 %v647, %v646
    %v676 = vpack.c.b16 %v649, %v648
    %v677 = vpack.c.b16 %v651, %v650
    %v678 = vpack.c.b16 %v653, %v652
    %v679 = vpack.c.b16 %v655, %v654
    %v680 = vpack.c.b16 %v657, %v656
    %v681 = vpack.c.b16 %v659, %v658
    %v682 = vpack.c.b16 %v661, %v660
    %v683 = vpack.c.b16 %v663, %v662
    %v684 = vpack.c.b16 %v665, %v664
    %v685 = vpack.c.b16 %v667, %v666
    %v686 = vpack.c.b16 %v669, %v668
    %v687 = vpack.c.b16 %v671, %v670
    %704 = vmatprep.subr.bf16.mxu0 0
    %705 = vmatpush1.bf16.msra.mxu0 %v679
    %706 = vmatprep.subr.bf16.mxu0 0
    %707 = vmatpush1.bf16.msra.mxu0 %v678
    %708 = vmatprep.subr.bf16.mxu0 0
    %709 = vmatpush1.bf16.msra.mxu0 %v677
    %710 = vmatprep.subr.bf16.mxu0 0
    %711 = vmatpush1.bf16.msra.mxu0 %v676
    %712 = vmatprep.subr.bf16.mxu0 0
    %713 = vmatpush1.bf16.msra.mxu0 %v675
    %714 = vmatprep.subr.bf16.mxu0 0
    %715 = vmatpush1.bf16.msra.mxu0 %v674
    %716 = vmatprep.subr.bf16.mxu0 0
    %717 = vmatpush1.bf16.msra.mxu0 %v673
    %718 = vmatprep.subr.bf16.mxu0 0
    %719 = vmatpush1.bf16.msra.mxu0 %v672
    %720 = vmatprep.subr.bf16.mxu0 0
    %721 = vmatpush2.bf16.msra.mxu0 %v687
    %722 = vmatprep.subr.bf16.mxu0 0
    %723 = vmatpush2.bf16.msra.mxu0 %v686
    %724 = vmatprep.subr.bf16.mxu0 0
    %725 = vmatpush2.bf16.msra.mxu0 %v685
    %726 = vmatprep.subr.bf16.mxu0 0
    %727 = vmatpush2.bf16.msra.mxu0 %v684
    %728 = vmatprep.subr.bf16.mxu0 0
    %729 = vmatpush2.bf16.msra.mxu0 %v683
    %730 = vmatprep.subr.bf16.mxu0 0
    %731 = vmatpush2.bf16.msra.mxu0 %v682
    %732 = vmatprep.subr.bf16.mxu0 0
    %733 = vmatpush2.bf16.msra.mxu0 %v681
    %734 = vmatprep.subr.bf16.mxu0 0
    %735 = vmatpush2.bf16.msra.mxu0 %v680
    %736 = vmatprep.mubr.bf16.mxu0 %v607
    %737 = vmatmul.mubr.bf16.gmra.mxu0 %v606
    %v738 = vpop.f32.mrf.mxu0
    %v739 = vadd.f32 %v77, %v738
    %v740 = vpop.f32.mrf.mxu0
    %v741 = vpop.f32.mrf.mxu0
    %v742 = vadd.f32 %v77, %v741
    %v743 = vpop.f32.mrf.mxu0
    %744 = vdwg.mxu0
    %v745 = vadd.f32 %v401, %v739
    %v746 = vadd.f32 %v402, %v742
    %v747 = vld [vmem:[#allocation7 + $0x1] ss:$0 sm:$0xff]
    %v748 = vld [vmem:[#allocation7 + $0x3] ss:$0 sm:$0xff]
    %s749 = scalar_lea.vmem [#allocation7], 18
    %v750 = vld [vmem:[%s749] ss:$8 sm:$0x3]
    %v751 = vld [vmem:[#allocation7 + $0x5] ss:$0 sm:$0xff]
    %v752 = vld [vmem:[#allocation9 + $0x80] sm:$0xff]
    %v753 = vld [vmem:[#allocation9 + $0x88] sm:$0xff]
    %v754 = vld [vmem:[#allocation9 + $0x90] sm:$0xff]
    %v755 = vld [vmem:[#allocation9 + $0x98] sm:$0xff]
    %v756 = vld [vmem:[#allocation9 + $0xa0] sm:$0xff]
    %v757 = vld [vmem:[#allocation9 + $0xa8] sm:$0xff]
    %v758 = vld [vmem:[#allocation9 + $0xb0] sm:$0xff]
    %v759 = vld [vmem:[#allocation9 + $0xb8] sm:$0xff]
    %v760 = vld [vmem:[#allocation9 + $0xc0] sm:$0xff]
    %v761 = vld [vmem:[#allocation9 + $0xc8] sm:$0xff]
    %v762 = vld [vmem:[#allocation9 + $0xd0] sm:$0xff]
    %v763 = vld [vmem:[#allocation9 + $0xd8] sm:$0xff]
    %v764 = vld [vmem:[#allocation9 + $0xe0] sm:$0xff]
    %v765 = vld [vmem:[#allocation9 + $0xe8] sm:$0xff]
    %v766 = vld [vmem:[#allocation9 + $0xf0] sm:$0xff]
    %v767 = vld [vmem:[#allocation9 + $0xf8] sm:$0xff]
    %v768 = vld [vmem:[#allocation9 + $0x104] sm:$0xf]
    %v769 = vld [vmem:[#allocation9 + $0x10c] sm:$0xf]
    %v770 = vld [vmem:[#allocation9 + $0x114] sm:$0xf]
    %v771 = vld [vmem:[#allocation9 + $0x11c] sm:$0xf]
    %v772 = vld [vmem:[#allocation9 + $0x124] sm:$0xf]
    %v773 = vld [vmem:[#allocation9 + $0x12c] sm:$0xf]
    %v774 = vld [vmem:[#allocation9 + $0x134] sm:$0xf]
    %v775 = vld [vmem:[#allocation9 + $0x13c] sm:$0xf]
    %v776 = vld [vmem:[#allocation9 + $0x144] sm:$0xf]
    %v777 = vld [vmem:[#allocation9 + $0x14c] sm:$0xf]
    %v778 = vld [vmem:[#allocation9 + $0x154] sm:$0xf]
    %v779 = vld [vmem:[#allocation9 + $0x15c] sm:$0xf]
    %v780 = vld [vmem:[#allocation9 + $0x164] sm:$0xf]
    %v781 = vld [vmem:[#allocation9 + $0x16c] sm:$0xf]
    %v782 = vld [vmem:[#allocation9 + $0x174] sm:$0xf]
    %v783 = vld [vmem:[#allocation9 + $0x17c] sm:$0xf]
    %v784 = vld [vmem:[#allocation9 + $0x184] sm:$0xf]
    %v785 = vld [vmem:[#allocation9 + $0x18c] sm:$0xf]
    %v786 = vld [vmem:[#allocation9 + $0x194] sm:$0xf]
    %v787 = vld [vmem:[#allocation9 + $0x19c] sm:$0xf]
    %v788 = vld [vmem:[#allocation9 + $0x1a4] sm:$0xf]
    %v789 = vld [vmem:[#allocation9 + $0x1ac] sm:$0xf]
    %v790 = vld [vmem:[#allocation9 + $0x1b4] sm:$0xf]
    %v791 = vld [vmem:[#allocation9 + $0x1bc] sm:$0xf]
    %v792 = vld [vmem:[#allocation9 + $0x1c4] sm:$0xf]
    %v793 = vld [vmem:[#allocation9 + $0x1cc] sm:$0xf]
    %v794 = vld [vmem:[#allocation9 + $0x1d4] sm:$0xf]
    %v795 = vld [vmem:[#allocation9 + $0x1dc] sm:$0xf]
    %v796 = vld [vmem:[#allocation9 + $0x1e4] sm:$0xf]
    %v797 = vld [vmem:[#allocation9 + $0x1ec] sm:$0xf]
    %v798 = vld [vmem:[#allocation9 + $0x1f4] sm:$0xf]
    %v799 = vld [vmem:[#allocation9 + $0x1fc] sm:$0xf]
    %800 = vadd.xlane.f32.xlu0 %v745
    %v801 = vpop.xlane.xlu0 %800
    %802 = vadd.xlane.f32.xlu0 %v746
    %v803 = vpop.xlane.xlu0 %802
    %v804 = vmul.f32 %v801, %v130
    %v805 = vmul.f32 %v803, %v130
    %v806 = vmul.f32 %v745, %v745
    %v807 = vmul.f32 %v746, %v746
    %808 = vadd.xlane.f32.xlu0 %v806
    %v809 = vpop.xlane.xlu0 %808
    %810 = vadd.xlane.f32.xlu0 %v807
    %v811 = vpop.xlane.xlu0 %810
    %v812 = vmul.f32 %v809, %v130
    %v813 = vmul.f32 %v811, %v130
    %v814 = vmul.f32 %v804, %v804
    %v815 = vmul.f32 %v805, %v805
    %v816 = vsub.f32 %v812, %v814
    %v817 = vsub.f32 %v813, %v815
    %v818 = vmax.f32 %v816, 0.0
    %v819 = vmax.f32 %v817, 0.0
    %v820 = vsub.f32 %v745, %v804
    %v821 = vsub.f32 %v746, %v805
    %v822 = vadd.f32 %v818, 1e-05
    %v823 = vadd.f32 %v819, 1e-05
    %v824 = vrsqrt.pop %v822
    %v825 = vrsqrt.pop %v823
    %v826 = vmul.f32 %v820, %v824
    %v827 = vmul.f32 %v821, %v825
    %v828 = vmul.f32 %v826, %v747
    %v829 = vmul.f32 %v827, %v747
    %v830 = vadd.f32 %v828, %v748
    %v831 = vadd.f32 %v829, %v748
    %s832 = sld [smem:[#allocation2 + $0x80]]
    %s833 = sld [smem:[#allocation2 + $0x88]]
    %s834 = sld [smem:[#allocation2 + $0x90]]
    %v835 = vstv %s832
    %v836 = vmul.f32 %v835, %v830
    %v837 = vmul.f32 %v835, %v831
    %v838 = vstv %s833
    %v839 = vadd.f32 %v836, %v838
    %v840 = vadd.f32 %v837, %v838
    %v841 = vmul.f32 %v839, %v839
    %v842 = vmul.f32 %v840, %v840
    %v843 = vmul.f32 %v841, %v839
    %v844 = vmul.f32 %v842, %v840
    %v845 = vmul.f32 %v843, 0.044715
    %v846 = vmul.f32 %v844, 0.044715
    %v847 = vadd.f32 %v839, %v845
    %v848 = vadd.f32 %v840, %v846
    %v849 = vmul.f32 %v847, 0.7978846
    %v850 = vmul.f32 %v848, 0.7978846
    %v851 = vtanh.pop %v849
    %v852 = vtanh.pop %v850
    %v853 = vstv %s834
    %v854 = vmul.f32 %v853, %v839
    %v855 = vmul.f32 %v853, %v840
    %v856 = vadd.f32 %v851, 1.0
    %v857 = vadd.f32 %v852, 1.0
    %v858 = vmul.f32 %v854, %v856
    %v859 = vmul.f32 %v855, %v857
    %s860 = sld [smem:[#allocation2 + $0x81]]
    %s861 = sld [smem:[#allocation2 + $0x89]]
    %s862 = sld [smem:[#allocation2 + $0x91]]
    %v863 = vstv %s860
    %v864 = vmul.f32 %v863, %v830
    %v865 = vmul.f32 %v863, %v831
    %v866 = vstv %s861
    %v867 = vadd.f32 %v864, %v866
    %v868 = vadd.f32 %v865, %v866
    %v869 = vmul.f32 %v867, %v867
    %v870 = vmul.f32 %v868, %v868
    %v871 = vmul.f32 %v869, %v867
    %v872 = vmul.f32 %v870, %v868
    %v873 = vmul.f32 %v871, 0.044715
    %v874 = vmul.f32 %v872, 0.044715
    %v875 = vadd.f32 %v867, %v873
    %v876 = vadd.f32 %v868, %v874
    %v877 = vmul.f32 %v875, 0.7978846
    %v878 = vmul.f32 %v876, 0.7978846
    %v879 = vtanh.pop %v877
    %v880 = vtanh.pop %v878
    %v881 = vstv %s862
    %v882 = vmul.f32 %v881, %v867
    %v883 = vmul.f32 %v881, %v868
    %v884 = vadd.f32 %v879, 1.0
    %v885 = vadd.f32 %v880, 1.0
    %v886 = vmul.f32 %v882, %v884
    %v887 = vmul.f32 %v883, %v885
    %s888 = sld [smem:[#allocation2 + $0x82]]
    %s889 = sld [smem:[#allocation2 + $0x8a]]
    %s890 = sld [smem:[#allocation2 + $0x92]]
    %v891 = vstv %s888
    %v892 = vmul.f32 %v891, %v830
    %v893 = vmul.f32 %v891, %v831
    %v894 = vstv %s889
    %v895 = vadd.f32 %v892, %v894
    %v896 = vadd.f32 %v893, %v894
    %v897 = vmul.f32 %v895, %v895
    %v898 = vmul.f32 %v896, %v896
    %v899 = vmul.f32 %v897, %v895
    %v900 = vmul.f32 %v898, %v896
    %v901 = vmul.f32 %v899, 0.044715
    %v902 = vmul.f32 %v900, 0.044715
    %v903 = vadd.f32 %v895, %v901
    %v904 = vadd.f32 %v896, %v902
    %v905 = vmul.f32 %v903, 0.7978846
    %v906 = vmul.f32 %v904, 0.7978846
    %v907 = vtanh.pop %v905
    %v908 = vtanh.pop %v906
    %v909 = vstv %s890
    %v910 = vmul.f32 %v909, %v895
    %v911 = vmul.f32 %v909, %v896
    %v912 = vadd.f32 %v907, 1.0
    %v913 = vadd.f32 %v908, 1.0
    %v914 = vmul.f32 %v910, %v912
    %v915 = vmul.f32 %v911, %v913
    %s916 = sld [smem:[#allocation2 + $0x83]]
    %s917 = sld [smem:[#allocation2 + $0x8b]]
    %s918 = sld [smem:[#allocation2 + $0x93]]
    %v919 = vstv %s916
    %v920 = vmul.f32 %v919, %v830
    %v921 = vmul.f32 %v919, %v831
    %v922 = vstv %s917
    %v923 = vadd.f32 %v920, %v922
    %v924 = vadd.f32 %v921, %v922
    %v925 = vmul.f32 %v923, %v923
    %v926 = vmul.f32 %v924, %v924
    %v927 = vmul.f32 %v925, %v923
    %v928 = vmul.f32 %v926, %v924
    %v929 = vmul.f32 %v927, 0.044715
    %v930 = vmul.f32 %v928, 0.044715
    %v931 = vadd.f32 %v923, %v929
    %v932 = vadd.f32 %v924, %v930
    %v933 = vmul.f32 %v931, 0.7978846
    %v934 = vmul.f32 %v932, 0.7978846
    %v935 = vtanh.pop %v933
    %v936 = vtanh.pop %v934
    %v937 = vstv %s918
    %v938 = vmul.f32 %v937, %v923
    %v939 = vmul.f32 %v937, %v924
    %v940 = vadd.f32 %v935, 1.0
    %v941 = vadd.f32 %v936, 1.0
    %v942 = vmul.f32 %v938, %v940
    %v943 = vmul.f32 %v939, %v941
    %s944 = sld [smem:[#allocation2 + $0x84]]
    %s945 = sld [smem:[#allocation2 + $0x8c]]
    %s946 = sld [smem:[#allocation2 + $0x94]]
    %v947 = vstv %s944
    %v948 = vmul.f32 %v947, %v830
    %v949 = vmul.f32 %v947, %v831
    %v950 = vstv %s945
    %v951 = vadd.f32 %v948, %v950
    %v952 = vadd.f32 %v949, %v950
    %v953 = vmul.f32 %v951, %v951
    %v954 = vmul.f32 %v952, %v952
    %v955 = vmul.f32 %v953, %v951
    %v956 = vmul.f32 %v954, %v952
    %v957 = vmul.f32 %v955, 0.044715
    %v958 = vmul.f32 %v956, 0.044715
    %v959 = vadd.f32 %v951, %v957
    %v960 = vadd.f32 %v952, %v958
    %v961 = vmul.f32 %v959, 0.7978846
    %v962 = vmul.f32 %v960, 0.7978846
    %v963 = vtanh.pop %v961
    %v964 = vtanh.pop %v962
    %v965 = vstv %s946
    %v966 = vmul.f32 %v965, %v951
    %v967 = vmul.f32 %v965, %v952
    %v968 = vadd.f32 %v963, 1.0
    %v969 = vadd.f32 %v964, 1.0
    %v970 = vmul.f32 %v966, %v968
    %v971 = vmul.f32 %v967, %v969
    %s972 = sld [smem:[#allocation2 + $0x85]]
    %s973 = sld [smem:[#allocation2 + $0x8d]]
    %s974 = sld [smem:[#allocation2 + $0x95]]
    %v975 = vstv %s972
    %v976 = vmul.f32 %v975, %v830
    %v977 = vmul.f32 %v975, %v831
    %v978 = vstv %s973
    %v979 = vadd.f32 %v976, %v978
    %v980 = vadd.f32 %v977, %v978
    %v981 = vmul.f32 %v979, %v979
    %v982 = vmul.f32 %v980, %v980
    %v983 = vmul.f32 %v981, %v979
    %v984 = vmul.f32 %v982, %v980
    %v985 = vmul.f32 %v983, 0.044715
    %v986 = vmul.f32 %v984, 0.044715
    %v987 = vadd.f32 %v979, %v985
    %v988 = vadd.f32 %v980, %v986
    %v989 = vmul.f32 %v987, 0.7978846
    %v990 = vmul.f32 %v988, 0.7978846
    %v991 = vtanh.pop %v989
    %v992 = vtanh.pop %v990
    %v993 = vstv %s974
    %v994 = vmul.f32 %v993, %v979
    %v995 = vmul.f32 %v993, %v980
    %v996 = vadd.f32 %v991, 1.0
    %v997 = vadd.f32 %v992, 1.0
    %v998 = vmul.f32 %v994, %v996
    %v999 = vmul.f32 %v995, %v997
    %s1000 = sld [smem:[#allocation2 + $0x86]]
    %s1001 = sld [smem:[#allocation2 + $0x8e]]
    %s1002 = sld [smem:[#allocation2 + $0x96]]
    %v1003 = vstv %s1000
    %v1004 = vmul.f32 %v1003, %v830
    %v1005 = vmul.f32 %v1003, %v831
    %v1006 = vstv %s1001
    %v1007 = vadd.f32 %v1004, %v1006
    %v1008 = vadd.f32 %v1005, %v1006
    %v1009 = vmul.f32 %v1007, %v1007
    %v1010 = vmul.f32 %v1008, %v1008
    %v1011 = vmul.f32 %v1009, %v1007
    %v1012 = vmul.f32 %v1010, %v1008
    %v1013 = vmul.f32 %v1011, 0.044715
    %v1014 = vmul.f32 %v1012, 0.044715
    %v1015 = vadd.f32 %v1007, %v1013
    %v1016 = vadd.f32 %v1008, %v1014
    %v1017 = vmul.f32 %v1015, 0.7978846
    %v1018 = vmul.f32 %v1016, 0.7978846
    %v1019 = vtanh.pop %v1017
    %v1020 = vtanh.pop %v1018
    %v1021 = vstv %s1002
    %v1022 = vmul.f32 %v1021, %v1007
    %v1023 = vmul.f32 %v1021, %v1008
    %v1024 = vadd.f32 %v1019, 1.0
    %v1025 = vadd.f32 %v1020, 1.0
    %v1026 = vmul.f32 %v1022, %v1024
    %v1027 = vmul.f32 %v1023, %v1025
    %s1028 = sld [smem:[#allocation2 + $0x87]]
    %s1029 = sld [smem:[#allocation2 + $0x8f]]
    %s1030 = sld [smem:[#allocation2 + $0x97]]
    %v1031 = vstv %s1028
    %v1032 = vmul.f32 %v1031, %v830
    %v1033 = vmul.f32 %v1031, %v831
    %v1034 = vstv %s1029
    %v1035 = vadd.f32 %v1032, %v1034
    %v1036 = vadd.f32 %v1033, %v1034
    %v1037 = vmul.f32 %v1035, %v1035
    %v1038 = vmul.f32 %v1036, %v1036
    %v1039 = vmul.f32 %v1037, %v1035
    %v1040 = vmul.f32 %v1038, %v1036
    %v1041 = vmul.f32 %v1039, 0.044715
    %v1042 = vmul.f32 %v1040, 0.044715
    %v1043 = vadd.f32 %v1035, %v1041
    %v1044 = vadd.f32 %v1036, %v1042
    %v1045 = vmul.f32 %v1043, 0.7978846
    %v1046 = vmul.f32 %v1044, 0.7978846
    %v1047 = vtanh.pop %v1045
    %v1048 = vtanh.pop %v1046
    %v1049 = vstv %s1030
    %v1050 = vmul.f32 %v1049, %v1035
    %v1051 = vmul.f32 %v1049, %v1036
    %v1052 = vadd.f32 %v1047, 1.0
    %v1053 = vadd.f32 %v1048, 1.0
    %v1054 = vmul.f32 %v1050, %v1052
    %v1055 = vmul.f32 %v1051, %v1053
    %v1056 = vadd.f32 %v858, %v886
    %v1057 = vadd.f32 %v859, %v887
    %v1058 = vadd.f32 %v914, %v942
    %v1059 = vadd.f32 %v915, %v943
    %v1060 = vadd.f32 %v970, %v998
    %v1061 = vadd.f32 %v971, %v999
    %v1062 = vadd.f32 %v1026, %v1054
    %v1063 = vadd.f32 %v1027, %v1055
    %v1064 = vadd.f32 %v1056, %v1058
    %v1065 = vadd.f32 %v1057, %v1059
    %v1066 = vadd.f32 %v1060, %v1062
    %v1067 = vadd.f32 %v1061, %v1063
    %v1068 = vadd.f32 %v1064, %v1066
    %v1069 = vadd.f32 %v1065, %v1067
    %s1070 = sld [smem:[#allocation2 + $0x98]]
    %v1071 = vstv %s1070
    %v1072 = vadd.f32 %v1068, %v1071
    %v1073 = vadd.f32 %v1069, %v1071
    %v1074 = vadd.f32 %v745, %v1072
    %v1075 = vadd.f32 %v746, %v1073
    %1076 = vadd.xlane.f32.xlu0 %v1074
    %v1077 = vpop.xlane.xlu0 %1076
    %1078 = vadd.xlane.f32.xlu0 %v1075
    %v1079 = vpop.xlane.xlu0 %1078
    %v1080 = vmul.f32 %v1077, %v130
    %v1081 = vmul.f32 %v1079, %v130
    %v1082 = vmul.f32 %v1074, %v1074
    %v1083 = vmul.f32 %v1075, %v1075
    %1084 = vadd.xlane.f32.xlu0 %v1082
    %v1085 = vpop.xlane.xlu0 %1084
    %1086 = vadd.xlane.f32.xlu0 %v1083
    %v1087 = vpop.xlane.xlu0 %1086
    %v1088 = vmul.f32 %v1085, %v130
    %v1089 = vmul.f32 %v1087, %v130
    %v1090 = vmul.f32 %v1080, %v1080
    %v1091 = vmul.f32 %v1081, %v1081
    %v1092 = vsub.f32 %v1088, %v1090
    %v1093 = vsub.f32 %v1089, %v1091
    %v1094 = vmax.f32 %v1092, 0.0
    %v1095 = vmax.f32 %v1093, 0.0
    %v1096 = vsub.f32 %v1074, %v1080
    %v1097 = vsub.f32 %v1075, %v1081
    %v1098 = vadd.f32 %v1094, 1e-05
    %v1099 = vadd.f32 %v1095, 1e-05
    %v1100 = vrsqrt.pop %v1098
    %v1101 = vrsqrt.pop %v1099
    %v1102 = vmul.f32 %v1096, %v1100
    %v1103 = vmul.f32 %v1097, %v1101
    %v1104 = vmul.f32 %v1102, %v747
    %v1105 = vmul.f32 %v1103, %v747
    %v1106 = vadd.f32 %v1104, %v748
    %v1107 = vadd.f32 %v1105, %v748
    %v1108 = vpack.c.bf16 %v1107, %v1106
    %v1110 = vlaneseq
    %v1111 = vshrl.u32 %v1110, 7
    %v1112 = vsub.s32 0, %v1111
    %v1113 = vrot.slane %v750, %v1112
    %v1114 = vlaneseq
    %v1115 = vshrl.u32 %v1114, 7
    %v1116 = vsub.s32 1, %v1115
    %v1117 = vrot.slane %v750, %v1116
    %v1136 = vunpack.c.l.b16 %v752
    %v1137 = vunpack.c.h.b16 %v752
    %v1138 = vunpack.c.l.b16 %v753
    %v1139 = vunpack.c.h.b16 %v753
    %v1140 = vunpack.c.l.b16 %v754
    %v1141 = vunpack.c.h.b16 %v754
    %v1142 = vunpack.c.l.b16 %v755
    %v1143 = vunpack.c.h.b16 %v755
    %v1144 = vunpack.c.l.b16 %v756
    %v1145 = vunpack.c.h.b16 %v756
    %v1146 = vunpack.c.l.b16 %v757
    %v1147 = vunpack.c.h.b16 %v757
    %v1148 = vunpack.c.l.b16 %v758
    %v1149 = vunpack.c.h.b16 %v758
    %v1150 = vunpack.c.l.b16 %v759
    %v1151 = vunpack.c.h.b16 %v759
    %v1152 = vunpack.c.l.b16 %v760
    %v1153 = vunpack.c.h.b16 %v760
    %v1154 = vunpack.c.l.b16 %v761
    %v1155 = vunpack.c.h.b16 %v761
    %v1156 = vunpack.c.l.b16 %v762
    %v1157 = vunpack.c.h.b16 %v762
    %v1158 = vunpack.c.l.b16 %v763
    %v1159 = vunpack.c.h.b16 %v763
    %v1160 = vunpack.c.l.b16 %v764
    %v1161 = vunpack.c.h.b16 %v764
    %v1162 = vunpack.c.l.b16 %v765
    %v1163 = vunpack.c.h.b16 %v765
    %v1164 = vunpack.c.l.b16 %v766
    %v1165 = vunpack.c.h.b16 %v766
    %v1166 = vunpack.c.l.b16 %v767
    %v1167 = vunpack.c.h.b16 %v767
    %v1168 = vpack.c.b16 %v1138, %v1136
    %v1169 = vpack.c.b16 %v1139, %v1137
    %v1170 = vpack.c.b16 %v1142, %v1140
    %v1171 = vpack.c.b16 %v1143, %v1141
    %v1172 = vpack.c.b16 %v1146, %v1144
    %v1173 = vpack.c.b16 %v1147, %v1145
    %v1174 = vpack.c.b16 %v1150, %v1148
    %v1175 = vpack.c.b16 %v1151, %v1149
    %v1176 = vpack.c.b16 %v1154, %v1152
    %v1177 = vpack.c.b16 %v1155, %v1153
    %v1178 = vpack.c.b16 %v1158, %v1156
    %v1179 = vpack.c.b16 %v1159, %v1157
    %v1180 = vpack.c.b16 %v1162, %v1160
    %v1181 = vpack.c.b16 %v1163, %v1161
    %v1182 = vpack.c.b16 %v1166, %v1164
    %v1183 = vpack.c.b16 %v1167, %v1165
    %1200 = vmatprep.subr.bf16.mxu0 %v1183
    %1201 = vmatpush1.bf16.msra.mxu0 %v1182
    %1202 = vmatprep.subr.bf16.mxu0 %v1181
    %1203 = vmatpush1.bf16.msra.mxu0 %v1180
    %1204 = vmatprep.subr.bf16.mxu0 %v1179
    %1205 = vmatpush1.bf16.msra.mxu0 %v1178
    %1206 = vmatprep.subr.bf16.mxu0 %v1177
    %1207 = vmatpush1.bf16.msra.mxu0 %v1176
    %1208 = vmatprep.subr.bf16.mxu0 %v1175
    %1209 = vmatpush1.bf16.msra.mxu0 %v1174
    %1210 = vmatprep.subr.bf16.mxu0 %v1173
    %1211 = vmatpush1.bf16.msra.mxu0 %v1172
    %1212 = vmatprep.subr.bf16.mxu0 %v1171
    %1213 = vmatpush1.bf16.msra.mxu0 %v1170
    %1214 = vmatprep.subr.bf16.mxu0 %v1169
    %1215 = vmatpush1.bf16.msra.mxu0 %v1168
    %1216 = vmatprep.subr.bf16.mxu0 0
    %1217 = vmatpush2.bf16.msra.mxu0 0
    %1218 = vmatprep.subr.bf16.mxu0 0
    %1219 = vmatpush2.bf16.msra.mxu0 0
    %1220 = vmatprep.subr.bf16.mxu0 0
    %1221 = vmatpush2.bf16.msra.mxu0 0
    %1222 = vmatprep.subr.bf16.mxu0 0
    %1223 = vmatpush2.bf16.msra.mxu0 0
    %1224 = vmatprep.subr.bf16.mxu0 0
    %1225 = vmatpush2.bf16.msra.mxu0 0
    %1226 = vmatprep.subr.bf16.mxu0 0
    %1227 = vmatpush2.bf16.msra.mxu0 0
    %1228 = vmatprep.subr.bf16.mxu0 0
    %1229 = vmatpush2.bf16.msra.mxu0 0
    %1230 = vmatprep.subr.bf16.mxu0 0
    %1231 = vmatpush2.bf16.msra.mxu0 0
    %1232 = vmatprep.mubr.bf16.mxu0 0
    %1233 = vmatmul.mubr.bf16.gmra.mxu0 %v1108
    %v1234 = vpop.f32.mrf.mxu0
    %v1235 = vadd.f32 %v1113, %v1234
    %v1236 = vpop.f32.mrf.mxu0
    %v1237 = vadd.f32 %v1117, %v1236
    %v1238 = vpop.f32.mrf.mxu0
    %v1239 = vadd.f32 %v1113, %v1238
    %v1240 = vpop.f32.mrf.mxu0
    %v1241 = vadd.f32 %v1117, %v1240
    %1242 = vdwg.mxu0
    %v1243 = vmul.f32 %v1235, 0.5
    %v1244 = vmul.f32 %v1237, 0.5
    %v1245 = vmul.f32 %v1239, 0.5
    %v1246 = vmul.f32 %v1241, 0.5
    %v1247 = vmul.f32 %v1235, 0.044715
    %v1248 = vmul.f32 %v1237, 0.044715
    %v1249 = vmul.f32 %v1239, 0.044715
    %v1250 = vmul.f32 %v1241, 0.044715
    %v1251 = vmul.f32 %v1247, %v1235
    %v1252 = vmul.f32 %v1248, %v1237
    %v1253 = vmul.f32 %v1249, %v1239
    %v1254 = vmul.f32 %v1250, %v1241
    %v1255 = vmul.f32 %v1251, %v1235
    %v1256 = vmul.f32 %v1252, %v1237
    %v1257 = vmul.f32 %v1253, %v1239
    %v1258 = vmul.f32 %v1254, %v1241
    %v1259 = vadd.f32 %v1235, %v1255
    %v1260 = vadd.f32 %v1237, %v1256
    %v1261 = vadd.f32 %v1239, %v1257
    %v1262 = vadd.f32 %v1241, %v1258
    %v1263 = vmul.f32 %v1259, 0.7978846
    %v1264 = vmul.f32 %v1260, 0.7978846
    %v1265 = vmul.f32 %v1261, 0.7978846
    %v1266 = vmul.f32 %v1262, 0.7978846
    %v1267 = vtanh.pop %v1263
    %v1268 = vtanh.pop %v1264
    %v1269 = vtanh.pop %v1265
    %v1270 = vtanh.pop %v1266
    %v1271 = vadd.f32 %v1267, 1.0
    %v1272 = vadd.f32 %v1268, 1.0
    %v1273 = vadd.f32 %v1269, 1.0
    %v1274 = vadd.f32 %v1270, 1.0
    %v1275 = vmul.f32 %v1243, %v1271
    %v1276 = vmul.f32 %v1244, %v1272
    %v1277 = vmul.f32 %v1245, %v1273
    %v1278 = vmul.f32 %v1246, %v1274
    %v1279 = vpack.c.bf16 %v1277, %v1275
    %v1280 = vpack.c.bf16 %v1278, %v1276
    %v1313 = vunpack.c.l.b16 %v768
    %v1314 = vunpack.c.l.b16 %v769
    %v1315 = vunpack.c.l.b16 %v770
    %v1316 = vunpack.c.l.b16 %v771
    %v1317 = vunpack.c.l.b16 %v772
    %v1318 = vunpack.c.l.b16 %v773
    %v1319 = vunpack.c.l.b16 %v774
    %v1320 = vunpack.c.l.b16 %v775
    %v1321 = vunpack.c.l.b16 %v776
    %v1322 = vunpack.c.l.b16 %v777
    %v1323 = vunpack.c.l.b16 %v778
    %v1324 = vunpack.c.l.b16 %v779
    %v1325 = vunpack.c.l.b16 %v780
    %v1326 = vunpack.c.l.b16 %v781
    %v1327 = vunpack.c.l.b16 %v782
    %v1328 = vunpack.c.l.b16 %v783
    %v1329 = vunpack.c.l.b16 %v784
    %v1330 = vunpack.c.l.b16 %v785
    %v1331 = vunpack.c.l.b16 %v786
    %v1332 = vunpack.c.l.b16 %v787
    %v1333 = vunpack.c.l.b16 %v788
    %v1334 = vunpack.c.l.b16 %v789
    %v1335 = vunpack.c.l.b16 %v790
    %v1336 = vunpack.c.l.b16 %v791
    %v1337 = vunpack.c.l.b16 %v792
    %v1338 = vunpack.c.l.b16 %v793
    %v1339 = vunpack.c.l.b16 %v794
    %v1340 = vunpack.c.l.b16 %v795
    %v1341 = vunpack.c.l.b16 %v796
    %v1342 = vunpack.c.l.b16 %v797
    %v1343 = vunpack.c.l.b16 %v798
    %v1344 = vunpack.c.l.b16 %v799
    %v1345 = vpack.c.b16 %v1314, %v1313
    %v1346 = vpack.c.b16 %v1316, %v1315
    %v1347 = vpack.c.b16 %v1318, %v1317
    %v1348 = vpack.c.b16 %v1320, %v1319
    %v1349 = vpack.c.b16 %v1322, %v1321
    %v1350 = vpack.c.b16 %v1324, %v1323
    %v1351 = vpack.c.b16 %v1326, %v1325
    %v1352 = vpack.c.b16 %v1328, %v1327
    %v1353 = vpack.c.b16 %v1330, %v1329
    %v1354 = vpack.c.b16 %v1332, %v1331
    %v1355 = vpack.c.b16 %v1334, %v1333
    %v1356 = vpack.c.b16 %v1336, %v1335
    %v1357 = vpack.c.b16 %v1338, %v1337
    %v1358 = vpack.c.b16 %v1340, %v1339
    %v1359 = vpack.c.b16 %v1342, %v1341
    %v1360 = vpack.c.b16 %v1344, %v1343
    %1377 = vmatprep.subr.bf16.mxu0 0
    %1378 = vmatpush1.bf16.msra.mxu0 %v1352
    %1379 = vmatprep.subr.bf16.mxu0 0
    %1380 = vmatpush1.bf16.msra.mxu0 %v1351
    %1381 = vmatprep.subr.bf16.mxu0 0
    %1382 = vmatpush1.bf16.msra.mxu0 %v1350
    %1383 = vmatprep.subr.bf16.mxu0 0
    %1384 = vmatpush1.bf16.msra.mxu0 %v1349
    %1385 = vmatprep.subr.bf16.mxu0 0
    %1386 = vmatpush1.bf16.msra.mxu0 %v1348
    %1387 = vmatprep.subr.bf16.mxu0 0
    %1388 = vmatpush1.bf16.msra.mxu0 %v1347
    %1389 = vmatprep.subr.bf16.mxu0 0
    %1390 = vmatpush1.bf16.msra.mxu0 %v1346
    %1391 = vmatprep.subr.bf16.mxu0 0
    %1392 = vmatpush1.bf16.msra.mxu0 %v1345
    %1393 = vmatprep.subr.bf16.mxu0 0
    %1394 = vmatpush2.bf16.msra.mxu0 %v1360
    %1395 = vmatprep.subr.bf16.mxu0 0
    %1396 = vmatpush2.bf16.msra.mxu0 %v1359
    %1397 = vmatprep.subr.bf16.mxu0 0
    %1398 = vmatpush2.bf16.msra.mxu0 %v1358
    %1399 = vmatprep.subr.bf16.mxu0 0
    %1400 = vmatpush2.bf16.msra.mxu0 %v1357
    %1401 = vmatprep.subr.bf16.mxu0 0
    %1402 = vmatpush2.bf16.msra.mxu0 %v1356
    %1403 = vmatprep.subr.bf16.mxu0 0
    %1404 = vmatpush2.bf16.msra.mxu0 %v1355
    %1405 = vmatprep.subr.bf16.mxu0 0
    %1406 = vmatpush2.bf16.msra.mxu0 %v1354
    %1407 = vmatprep.subr.bf16.mxu0 0
    %1408 = vmatpush2.bf16.msra.mxu0 %v1353
    %1409 = vmatprep.mubr.bf16.mxu0 %v1280
    %1410 = vmatmul.mubr.bf16.gmra.mxu0 %v1279
    %v1411 = vpop.f32.mrf.mxu0
    %v1412 = vadd.f32 %v751, %v1411
    %v1413 = vpop.f32.mrf.mxu0
    %v1414 = vpop.f32.mrf.mxu0
    %v1415 = vadd.f32 %v751, %v1414
    %v1416 = vpop.f32.mrf.mxu0
    %1417 = vdwg.mxu0
    %v1418 = vadd.f32 %v1074, %v1412
    %v1419 = vadd.f32 %v1075, %v1415
    %v1420 = vld [vmem:[#allocation7 + $0x6] ss:$0 sm:$0xff]
    %v1421 = vld [vmem:[#allocation7 + $0x7] ss:$0 sm:$0xff]
    %v1422 = vld [vmem:[#allocation7 + $0x10] ss:$0 sm:$0xff]
    %v1423 = vld [vmem:[#allocation9 + $0x200] sm:$0xf]
    %v1424 = vld [vmem:[#allocation9 + $0x208] sm:$0xf]
    %v1425 = vld [vmem:[#allocation9 + $0x210] sm:$0xf]
    %v1426 = vld [vmem:[#allocation9 + $0x218] sm:$0xf]
    %v1427 = vld [vmem:[#allocation9 + $0x220] sm:$0xf]
    %v1428 = vld [vmem:[#allocation9 + $0x228] sm:$0xf]
    %v1429 = vld [vmem:[#allocation9 + $0x230] sm:$0xf]
    %v1430 = vld [vmem:[#allocation9 + $0x238] sm:$0xf]
    %v1431 = vld [vmem:[#allocation9 + $0x240] sm:$0xf]
    %v1432 = vld [vmem:[#allocation9 + $0x248] sm:$0xf]
    %v1433 = vld [vmem:[#allocation9 + $0x250] sm:$0xf]
    %v1434 = vld [vmem:[#allocation9 + $0x258] sm:$0xf]
    %v1435 = vld [vmem:[#allocation9 + $0x260] sm:$0xf]
    %v1436 = vld [vmem:[#allocation9 + $0x268] sm:$0xf]
    %v1437 = vld [vmem:[#allocation9 + $0x270] sm:$0xf]
    %v1438 = vld [vmem:[#allocation9 + $0x278] sm:$0xf]
    %1439 = vadd.xlane.f32.xlu0 %v1418
    %v1440 = vpop.xlane.xlu0 %1439
    %1441 = vadd.xlane.f32.xlu0 %v1419
    %v1442 = vpop.xlane.xlu0 %1441
    %v1443 = vmul.f32 %v1440, %v130
    %v1444 = vmul.f32 %v1442, %v130
    %v1445 = vmul.f32 %v1418, %v1418
    %v1446 = vmul.f32 %v1419, %v1419
    %1447 = vadd.xlane.f32.xlu0 %v1445
    %v1448 = vpop.xlane.xlu0 %1447
    %1449 = vadd.xlane.f32.xlu0 %v1446
    %v1450 = vpop.xlane.xlu0 %1449
    %v1451 = vmul.f32 %v1448, %v130
    %v1452 = vmul.f32 %v1450, %v130
    %v1453 = vmul.f32 %v1443, %v1443
    %v1454 = vmul.f32 %v1444, %v1444
    %v1455 = vsub.f32 %v1451, %v1453
    %v1456 = vsub.f32 %v1452, %v1454
    %v1457 = vmax.f32 %v1455, 0.0
    %v1458 = vmax.f32 %v1456, 0.0
    %v1459 = vsub.f32 %v1418, %v1443
    %v1460 = vsub.f32 %v1419, %v1444
    %v1461 = vadd.f32 %v1457, 1e-05
    %v1462 = vadd.f32 %v1458, 1e-05
    %v1463 = vrsqrt.pop %v1461
    %v1464 = vrsqrt.pop %v1462
    %v1465 = vmul.f32 %v1459, %v1463
    %v1466 = vmul.f32 %v1460, %v1464
    %v1467 = vmul.f32 %v1465, %v1420
    %v1468 = vmul.f32 %v1466, %v1420
    %v1469 = vadd.f32 %v1467, %v1421
    %v1470 = vadd.f32 %v1468, %v1421
    %v1471 = vpack.c.bf16 %v1470, %v1469
    %v1488 = vunpack.c.l.b16 %v1423
    %v1489 = vunpack.c.l.b16 %v1424
    %v1490 = vunpack.c.l.b16 %v1425
    %v1491 = vunpack.c.l.b16 %v1426
    %v1492 = vunpack.c.l.b16 %v1427
    %v1493 = vunpack.c.l.b16 %v1428
    %v1494 = vunpack.c.l.b16 %v1429
    %v1495 = vunpack.c.l.b16 %v1430
    %v1496 = vunpack.c.l.b16 %v1431
    %v1497 = vunpack.c.l.b16 %v1432
    %v1498 = vunpack.c.l.b16 %v1433
    %v1499 = vunpack.c.l.b16 %v1434
    %v1500 = vunpack.c.l.b16 %v1435
    %v1501 = vunpack.c.l.b16 %v1436
    %v1502 = vunpack.c.l.b16 %v1437
    %v1503 = vunpack.c.l.b16 %v1438
    %v1504 = vpack.c.b16 %v1489, %v1488
    %v1505 = vpack.c.b16 %v1491, %v1490
    %v1506 = vpack.c.b16 %v1493, %v1492
    %v1507 = vpack.c.b16 %v1495, %v1494
    %v1508 = vpack.c.b16 %v1497, %v1496
    %v1509 = vpack.c.b16 %v1499, %v1498
    %v1510 = vpack.c.b16 %v1501, %v1500
    %v1511 = vpack.c.b16 %v1503, %v1502
    %1520 = vmatprep.subr.bf16.mxu0 0
    %1521 = vmatpush1.bf16.msra.mxu0 %v1511
    %1522 = vmatprep.subr.bf16.mxu0 0
    %1523 = vmatpush1.bf16.msra.mxu0 %v1510
    %1524 = vmatprep.subr.bf16.mxu0 0
    %1525 = vmatpush1.bf16.msra.mxu0 %v1509
    %1526 = vmatprep.subr.bf16.mxu0 0
    %1527 = vmatpush1.bf16.msra.mxu0 %v1508
    %1528 = vmatprep.subr.bf16.mxu0 0
    %1529 = vmatpush1.bf16.msra.mxu0 %v1507
    %1530 = vmatprep.subr.bf16.mxu0 0
    %1531 = vmatpush1.bf16.msra.mxu0 %v1506
    %1532 = vmatprep.subr.bf16.mxu0 0
    %1533 = vmatpush1.bf16.msra.mxu0 %v1505
    %1534 = vmatprep.subr.bf16.mxu0 0
    %1535 = vmatpush1.bf16.msra.mxu0 %v1504
    %1536 = vmatprep.subr.bf16.mxu0 0
    %1537 = vmatpush2.bf16.msra.mxu0 0
    %1538 = vmatprep.subr.bf16.mxu0 0
    %1539 = vmatpush2.bf16.msra.mxu0 0
    %1540 = vmatprep.subr.bf16.mxu0 0
    %1541 = vmatpush2.bf16.msra.mxu0 0
    %1542 = vmatprep.subr.bf16.mxu0 0
    %1543 = vmatpush2.bf16.msra.mxu0 0
    %1544 = vmatprep.subr.bf16.mxu0 0
    %1545 = vmatpush2.bf16.msra.mxu0 0
    %1546 = vmatprep.subr.bf16.mxu0 0
    %1547 = vmatpush2.bf16.msra.mxu0 0
    %1548 = vmatprep.subr.bf16.mxu0 0
    %1549 = vmatpush2.bf16.msra.mxu0 0
    %1550 = vmatprep.subr.bf16.mxu0 0
    %1551 = vmatpush2.bf16.msra.mxu0 0
    %1552 = vmatprep.mubr.bf16.mxu0 0
    %1553 = vmatmul.mubr.bf16.gmra.mxu0 %v1471
    %v1554 = vpop.f32.mrf.mxu0
    %v1555 = vadd.f32 %v1422, %v1554
    %v1556 = vpop.f32.mrf.mxu0
    %v1557 = vpop.f32.mrf.mxu0
    %v1558 = vadd.f32 %v1422, %v1557
    %v1559 = vpop.f32.mrf.mxu0
    %1560 = vdwg.mxu0
    %1561 = vst [vmem:[#allocation10] sm:$0xff] %v1555
    %1562 = vst [vmem:[#allocation10 + $0x8] sm:$0xff] %v1558
    // Predicated region
    $region34: #{tpu_custom_call.1} parent=1 // pred_check
      _
    $region35: #{tpu_custom_call.1} parent=1 // pred_check_branch
      %1564 = sbr.rel (0) target = $region37
    $region36: #{tpu_custom_call.1} parent=1 // pred_region
      %s1566 = ssub.s32 256, 256
      %1567 = vsyncadd [#allocation4], %s1566
      %s1568 = sshll.u32 [#allocation10], 4
      %s1569 = int_to_ptr.vmem [resolvable:$true] %s1568
      %1574 = dma.vmem_to_hbm [thread:$0]  %s1569, 256, %s4, [#allocation4], 128, 128, 8
    $region37: #{tpu_custom_call.1} parent=1 // pred_fallthru
      _
    // Predicated region
    $region38: #{tpu_custom_call.1} parent=1 // pred_check
      _
    $region39: #{tpu_custom_call.1} parent=1 // pred_check_branch
      %1576 = sbr.rel (0) target = $region41
    $region40: #{tpu_custom_call.1} parent=1 // pred_region
      %1577 = dma.done [#allocation4], 256
    $region41: #{tpu_custom_call.1} parent=1 // pred_fallthru
      _
    %1578 = vsyncpa [#allocation3], 1
    %1579 = vsyncpa [#allocation8], 1
    %1580 = vsyncpa [#allocation4], 1
    %1581 = vsyncpa [#allocation5], 1

</llo_original>
